<compile_context>
chip_gen: v5e
topology: v5e:2x2
jax: 0.10.0
libtpu: 0.0.40
codegen_flags: <defaults>
</compile_context>

<pallas_src>
import math
import numpy as np
import jax
import jax.numpy as jnp
from jax import lax
from jax.experimental import pallas as pl
from jax.experimental.pallas import tpu as pltpu

# ----------------------------- config (small) ------------------------------
B = 2                 # batch
PW = 32               # proj_width
DS = 8                # max_state_dim
DA = 8                # max_action_dim
S = 8                 # n_action_steps
C, H, W, P = 3, 16, 16, 8         # image (NCHW) + patch size
NP = (H // P) * (W // P)          # image tokens per camera = 4
PD = C * P * P                    # patch dim = 192
LT = 8                # language tokens
VOCAB = 64
HID = 4 * PW          # transformer MLP hidden = 128
LANE = 128            # lane padding for narrow (state/action) features
DS_PAD = 16           # state feature dim padded (bf16 sublane alignment)
NEG_INF = -1e30

# W32 slab row offsets (all matrices whose output width is PW, rows-stacked).
# All offsets are multiples of 16 so bf16 sublane-packed slices stay aligned.
O_IMG = 0
O_STATE = O_IMG + PD          # 192
O_AIN = O_STATE + DS_PAD      # 208
O_MIA = O_AIN + LANE          # 336
O_MIT = O_MIA + PW            # 368
O_MOUT = O_MIT + PW           # 400
O_WQ = O_MOUT + PW            # 432
O_WK = O_WQ + PW              # 464
O_WV = O_WK + PW              # 496
O_WO = O_WV + PW              # 528
O_FF2 = O_WO + PW             # 560
W32_ROWS = O_FF2 + HID        # 688

# bias slab rows (each row zero-padded to LANE columns)
BR_IMG, BR_STATE, BR_AIN, BR_MIN, BR_MOUT = 0, 1, 2, 3, 4
BR_Q, BR_K, BR_V, BR_O, BR_FF1, BR_FF2, BR_AOUT = 5, 6, 7, 8, 9, 10, 11
BIAS_ROWS = 12


# ================================ glue helpers ================================

def sinusoidal_pos_emb(time, dim, min_period, max_period):
    fraction = jnp.linspace(0.0, 1.0, dim // 2)
    period = min_period * (max_period / min_period) ** fraction
    scaling = (1.0 / period) * 2.0 * math.pi
    sin_input = scaling[None, :] * time[:, None]
    return jnp.concatenate([jnp.sin(sin_input), jnp.cos(sin_input)], axis=1).astype(jnp.float32)


def make_att_2d_masks(pad_masks, att_masks):
    cumsum = jnp.cumsum(att_masks.astype(jnp.int32), axis=1)
    att_2d = cumsum[:, None, :] <= cumsum[:, :, None]
    pad_2d = pad_masks[:, None, :] & pad_masks[:, :, None]
    return att_2d & pad_2d


def image_to_patches(img):
    b, c, h, w = img.shape
    patches = img.reshape(b, c, h // P, P, w // P, P)
    patches = jnp.transpose(patches, (0, 2, 4, 1, 3, 5))
    return patches.reshape(b, (h // P) * (w // P), c * P * P)


# ================================ parameters =================================

def init_params(key):
    ks = jax.random.split(key, 26)

    def w(k, shape, scale=0.02):
        return (scale * jax.random.normal(k, shape)).astype(jnp.float32)

    return dict(
        # stand-in SigLIP patch embedding + language token embedding
        img_w=w(ks[0], (PD, PW)), img_b=w(ks[1], (1, PW)),
        lang_emb_table=w(ks[2], (VOCAB, PW), 1.0 / math.sqrt(PW)),
        # PI0 projections (Linear(in, out) stored as (in, out) for x @ W)
        state_proj_w=w(ks[3], (DS, PW)), state_proj_b=w(ks[4], (1, PW)),
        action_in_w=w(ks[5], (DA, PW)), action_in_b=w(ks[6], (1, PW)),
        # action_time_mlp_in: Linear(2*PW, PW) split into action/time halves
        mlp_in_w_a=w(ks[7], (PW, PW)), mlp_in_w_t=w(ks[8], (PW, PW)), mlp_in_b=w(ks[9], (1, PW)),
        mlp_out_w=w(ks[10], (PW, PW)), mlp_out_b=w(ks[11], (1, PW)),
        # joint transformer block (PaliGemma + Gemma-expert stand-in)
        wq=w(ks[12], (PW, PW)), bq=w(ks[13], (1, PW)),
        wk=w(ks[14], (PW, PW)), bk=w(ks[15], (1, PW)),
        wv=w(ks[16], (PW, PW)), bv=w(ks[17], (1, PW)),
        wo=w(ks[18], (PW, PW)), bo=w(ks[19], (1, PW)),
        ff_w1=w(ks[20], (PW, HID)), ff_b1=w(ks[21], (1, HID)),
        ff_w2=w(ks[22], (HID, PW)), ff_b2=w(ks[23], (1, PW)),
        # action_out_proj
        action_out_w=w(ks[24], (PW, DA)), action_out_b=w(ks[25], (1, DA)),
    )


def pack_params(raw):
    """Pack the many tiny weights into three VMEM-friendly slabs (few DMAs)."""
    state_w = jnp.zeros((DS_PAD, PW), jnp.float32).at[:DS, :].set(raw["state_proj_w"])
    ain_w = jnp.zeros((LANE, PW), jnp.float32).at[:DA, :].set(raw["action_in_w"])
    w32 = jnp.concatenate(
        [raw["img_w"], state_w, ain_w,
         raw["mlp_in_w_a"], raw["mlp_in_w_t"], raw["mlp_out_w"],
         raw["wq"], raw["wk"], raw["wv"], raw["wo"], raw["ff_w2"]],
        axis=0).astype(jnp.bfloat16)
    assert w32.shape == (W32_ROWS, PW)

    aout_w = jnp.zeros((PW, LANE), jnp.float32).at[:, :DA].set(raw["action_out_w"])
    w128 = jnp.concatenate([raw["ff_w1"], aout_w], axis=0).astype(jnp.bfloat16)
    assert w128.shape == (2 * PW, LANE)

    def brow(v, width):
        return jnp.zeros((1, LANE), jnp.float32).at[:, :width].set(v.reshape(1, width))

    bias = jnp.concatenate(
        [brow(raw["img_b"], PW), brow(raw["state_proj_b"], PW), brow(raw["action_in_b"], PW),
         brow(raw["mlp_in_b"], PW), brow(raw["mlp_out_b"], PW),
         brow(raw["bq"], PW), brow(raw["bk"], PW), brow(raw["bv"], PW), brow(raw["bo"], PW),
         brow(raw["ff_b1"], HID), brow(raw["ff_b2"], PW), brow(raw["action_out_b"], DA)],
        axis=0)
    assert bias.shape == (BIAS_ROWS, LANE)

    return dict(lang_emb_table=raw["lang_emb_table"], w32=w32, w128=w128, bias=bias)


# ============================ fused forward pass =============================

def pi0_forward(params, images, img_masks, lang_tokens, lang_masks,
                state, actions, noise, time):
    """PI0FlowMatching.forward -> per-element losses (B, n_action_steps, max_action_dim)."""
    b, s, da = actions.shape
    nbs = b * s

    # ------------------- glue: layout / gather prep (tiny XLA) -------------------
    patch_list, img_pad_list = [], []
    for img, m in zip(images, img_masks):
        pt = image_to_patches(img)                                   # (B, NP, PD)
        patch_list.append(pt)
        img_pad_list.append(jnp.broadcast_to(m[:, None], (b, pt.shape[1])))
    patches = jnp.concatenate(patch_list, axis=1)                    # (B, npt, PD)
    npt = patches.shape[1]
    img_pad = jnp.concatenate(img_pad_list, axis=1)                  # (B, npt)
    patches_flat = patches.reshape(b * npt, PD).astype(jnp.bfloat16)

    lang_emb = (params["lang_emb_table"][lang_tokens] * math.sqrt(PW)).astype(jnp.float32)
    lt = lang_emb.shape[1]
    lang_flat = lang_emb.reshape(b * lt, PW)

    st0 = state[:, 0, :]                                             # (B, DS)
    st_pad = jnp.zeros((b, DS_PAD), jnp.float32).at[:, :st0.shape[1]].set(st0)

    def pad_lane(x):                                                 # (B,S,DA) -> (B*S, LANE)
        return jnp.zeros((nbs, LANE), jnp.float32).at[:, :da].set(x.reshape(nbs, da))

    flow_in = jnp.concatenate(
        [pad_lane(actions), pad_lane(noise),
         jnp.broadcast_to(time[:, None, None], (b, s, LANE)).reshape(nbs, LANE)],
        axis=0).astype(jnp.float32)                                  # (3*B*S, LANE)

    temb = sinusoidal_pos_emb(time, PW, 0.004, 4.0)                  # (B, PW)
    temb = temb.astype(jnp.bfloat16).astype(jnp.float32)             # mimic .to(bf16)
    temb_b = jnp.broadcast_to(temb[:, None, :], (b, s, PW)).reshape(nbs, PW)

    # joint sequence row layout: segment-major, batch-major inside each segment
    n_img, n_lang, n_at, n_state = b * npt, b * lt, b * s, b
    r_img, r_lang = 0, b * npt
    r_at = r_lang + n_lang
    r_state = r_at + n_at
    bl = r_state + n_state                                           # total joint rows

    # per-batch masks in the ORIGINAL token order (as in the torch module)
    pad_masks = jnp.concatenate(
        [img_pad, lang_masks, jnp.ones((b, 1 + s), dtype=bool)], axis=1)        # (B, L)
    att_list = [0] * (npt + lt) + [1] + [1] + [0] * (s - 1)
    att_masks = jnp.broadcast_to(jnp.asarray(att_list, jnp.int32)[None, :],
                                 (b, len(att_list)))
    att_2d = make_att_2d_masks(pad_masks, att_masks)                 # (B, L, L) bool
    _position_ids = jnp.cumsum(pad_masks.astype(jnp.int32), axis=1) - 1
    # TODO(synk): position_ids unused — the synthetic joint block has no RoPE.

    # permute the per-batch (L, L) mask into the global segment-major layout and
    # turn it into an additive bias (0 keep / -1e30 drop); cross-batch = drop.
    lseq = npt + lt + 1 + s
    perm = np.zeros((b, lseq), dtype=np.int32)
    for bb in range(b):
        for j in range(lseq):
            if j < npt:
                g = r_img + bb * npt + j
            elif j < npt + lt:
                g = r_lang + bb * lt + (j - npt)
            elif j == npt + lt:
                g = r_state + bb
            else:
                g = r_at + bb * s + (j - npt - lt - 1)
            perm[bb, j] = g
    mbias = jnp.full((bl, bl), NEG_INF, jnp.float32)
    for bb in range(b):
        g = perm[bb]
        mbias = mbias.at[g[:, None], g[None, :]].set(
            jnp.where(att_2d[bb], 0.0, NEG_INF).astype(jnp.float32))

    # ------------------------------ fused kernel ---------------------------------
    def kernel(patch_ref, lang_ref, state_ref, flow_ref, temb_ref, mbias_ref,
               w32_ref, w128_ref, bias_ref, loss_ref, x_ref):
        f32, bf16 = jnp.float32, jnp.bfloat16
        bvec = bias_ref[...]                                          # (BIAS_ROWS, LANE)

        def brow(r, width=PW):
            return bvec[r:r + 1, 0:width]

        # flow-matching interpolation (lane-padded): x_t = t*n + (1-t)*a, u_t = n-a
        acts = flow_ref[0:nbs, :]
        noz = flow_ref[nbs:2 * nbs, :]
        tt = flow_ref[2 * nbs:3 * nbs, :]
        x_t = tt * noz + (1.0 - tt) * acts                            # (B*S, LANE) f32
        u_t = noz - acts

        # image patch embedding (SigLIP stand-in), sqrt(d) scale, bf16 round-trip
        img = jnp.dot(patch_ref[...], w32_ref[O_IMG:O_IMG + PD, :],
                      preferred_element_type=f32) + brow(BR_IMG)
        img = (img * math.sqrt(PW)).astype(bf16).astype(f32)

        # state projection (bf16 round-trip as in the torch module)
        st = jnp.dot(state_ref[...].astype(bf16),
                     w32_ref[O_STATE:O_STATE + DS_PAD, :],
                     preferred_element_type=f32) + brow(BR_STATE)
        st = st.astype(bf16).astype(f32)

        # action/time MLP: mlp_in([action_emb, time_emb]) -> SiLU -> mlp_out
        a_emb = jnp.dot(x_t.astype(bf16), w32_ref[O_AIN:O_AIN + LANE, :],
                        preferred_element_type=f32) + brow(BR_AIN)
        h = (jnp.dot(a_emb.astype(bf16), w32_ref[O_MIA:O_MIA + PW, :],
                     preferred_element_type=f32)
             + jnp.dot(temb_ref[...].astype(bf16), w32_ref[O_MIT:O_MIT + PW, :],
                       preferred_element_type=f32)
             + brow(BR_MIN))
        h = h * jax.nn.sigmoid(h)                                     # SiLU (f32)
        at_emb = jnp.dot(h.astype(bf16), w32_ref[O_MOUT:O_MOUT + PW, :],
                         preferred_element_type=f32) + brow(BR_MOUT)

        # assemble the joint sequence (segment-major rows) in VMEM scratch
        x_ref[r_img:r_img + n_img, :] = img
        x_ref[r_lang:r_lang + n_lang, :] = lang_ref[...]
        x_ref[r_at:r_at + n_at, :] = at_emb
        x_ref[r_state:r_state + n_state, :] = st
        x = x_ref[...]                                                # (bl, PW) f32
        xb = x.astype(bf16)

        # joint masked self-attention (batch separation lives in the mask bias)
        q = jnp.dot(xb, w32_ref[O_WQ:O_WQ + PW, :], preferred_element_type=f32) + brow(BR_Q)
        k = jnp.dot(xb, w32_ref[O_WK:O_WK + PW, :], preferred_element_type=f32) + brow(BR_K)
        v = jnp.dot(xb, w32_ref[O_WV:O_WV + PW, :], preferred_element_type=f32) + brow(BR_V)
        sc = lax.dot_general(q.astype(bf16), k.astype(bf16),
                             dimension_numbers=(((1,), (1,)), ((), ())),
                             preferred_element_type=f32)              # (bl, bl)
        sc = sc * (1.0 / math.sqrt(PW)) + mbias_ref[...]              # additive mask
        sc = sc - jnp.max(sc, axis=-1, keepdims=True)
        p = jnp.exp(sc)
        p = p * pl.reciprocal(jnp.sum(p, axis=-1, keepdims=True), approx=True)
        att = jnp.dot(p.astype(bf16), v.astype(bf16), preferred_element_type=f32)
        y = x + jnp.dot(att.astype(bf16), w32_ref[O_WO:O_WO + PW, :],
                        preferred_element_type=f32) + brow(BR_O)

        # SiLU MLP + residual
        hh = jnp.dot(y.astype(bf16), w128_ref[0:PW, :],
                     preferred_element_type=f32) + brow(BR_FF1, HID)
        hh = hh * jax.nn.sigmoid(hh)
        out = y + jnp.dot(hh.astype(bf16), w32_ref[O_FF2:O_FF2 + HID, :],
                          preferred_element_type=f32) + brow(BR_FF2)

        # action_out_proj on the action rows + elementwise MSE (lane-dense output)
        sfx = out[r_at:r_at + n_at, :]                                # (B*S, PW) f32
        v_t = jnp.dot(sfx.astype(bf16), w128_ref[PW:2 * PW, :],
                      preferred_element_type=f32) + brow(BR_AOUT, LANE)
        d = v_t - u_t
        loss_ref[...] = d * d

    vmem = pltpu.MemorySpace.VMEM
    loss_pad = pl.pallas_call(
        kernel,
        out_shape=jax.ShapeDtypeStruct((nbs, LANE), jnp.float32),
        in_specs=[pl.BlockSpec(memory_space=vmem)] * 9,
        out_specs=pl.BlockSpec(memory_space=vmem),
        scratch_shapes=[pltpu.VMEM((bl, PW), jnp.float32)],
    )(patches_flat, lang_flat, st_pad, flow_in, temb_b, mbias,
      params["w32"], params["w128"], params["bias"])

    return loss_pad[:, :da].reshape(b, s, da)


# =================================== main ====================================

if __name__ == "__main__":
    key = jax.random.PRNGKey(0)
    k_par, k_img, k_lang, k_state, k_act, k_noise, k_time = jax.random.split(key, 7)

    params = pack_params(init_params(k_par))

    images = [jax.random.normal(k_img, (B, C, H, W), jnp.float32)]   # NCHW, one camera
    img_masks = [jnp.ones((B,), dtype=bool)]
    lang_tokens = jax.random.randint(k_lang, (B, LT), 0, VOCAB)
    lang_masks = jnp.ones((B, LT), dtype=bool)
    state = jax.random.normal(k_state, (B, 1, DS), jnp.float32)
    actions = jax.random.normal(k_act, (B, S, DA), jnp.float32)
    # deterministic noise / time (the torch module would sample these)
    noise = jax.random.normal(k_noise, (B, S, DA), jnp.float32)
    time = jax.random.uniform(k_time, (B,), jnp.float32, 0.001, 1.0)

    losses = pi0_forward(params, images, img_masks, lang_tokens, lang_masks,
                         state, actions, noise, time)
    losses = jax.block_until_ready(losses)
    assert losses.shape == (B, S, DA) and losses.dtype == jnp.float32
    assert bool(jnp.all(jnp.isfinite(losses)))
    print("KERNEL_OK")
</pallas_src>

<mosaic_0001>
module attributes {stable_mosaic.version = 11 : i64} {
  func.func @kernel(%arg0: memref<8x192xbf16, #tpu.memory_space<vmem>>, %arg1: memref<16x32xf32, #tpu.memory_space<vmem>>, %arg2: memref<2x16xf32, #tpu.memory_space<vmem>>, %arg3: memref<48x128xf32, #tpu.memory_space<vmem>>, %arg4: memref<16x32xf32, #tpu.memory_space<vmem>>, %arg5: memref<42x42xf32, #tpu.memory_space<vmem>>, %arg6: memref<688x32xbf16, #tpu.memory_space<vmem>>, %arg7: memref<64x128xbf16, #tpu.memory_space<vmem>>, %arg8: memref<12x128xf32, #tpu.memory_space<vmem>>, %arg9: memref<16x128xf32, #tpu.memory_space<vmem>>, %arg10: memref<42x32xf32, #tpu.memory_space<vmem>>) attributes {dimension_semantics = [], scalar_prefetch = 0 : i64, scratch_operands = 1 : i64, tpu.core_type = #tpu.core_type<tc>} {
    %c0 = arith.constant 0 : index
    %c0_0 = arith.constant 0 : index
    %0 = vector.load %arg8[%c0, %c0_0] : memref<12x128xf32, #tpu.memory_space<vmem>>, vector<12x128xf32>
    %c0_1 = arith.constant 0 : index
    %c0_2 = arith.constant 0 : index
    %1 = vector.load %arg3[%c0_1, %c0_2] : memref<48x128xf32, #tpu.memory_space<vmem>>, vector<16x128xf32>
    %c16 = arith.constant 16 : index
    %c0_3 = arith.constant 0 : index
    %2 = vector.load %arg3[%c16, %c0_3] : memref<48x128xf32, #tpu.memory_space<vmem>>, vector<16x128xf32>
    %c32 = arith.constant 32 : index
    %c0_4 = arith.constant 0 : index
    %3 = vector.load %arg3[%c32, %c0_4] : memref<48x128xf32, #tpu.memory_space<vmem>>, vector<16x128xf32>
    %4 = arith.mulf %3, %2 : vector<16x128xf32>
    %cst = arith.constant 1.000000e+00 : f32
    %5 = vector.broadcast %cst : f32 to vector<16x128xf32>
    %6 = arith.subf %5, %3 : vector<16x128xf32>
    %7 = arith.mulf %6, %1 : vector<16x128xf32>
    %8 = arith.addf %4, %7 : vector<16x128xf32>
    %9 = arith.subf %2, %1 : vector<16x128xf32>
    %c0_5 = arith.constant 0 : index
    %c0_6 = arith.constant 0 : index
    %10 = vector.load %arg0[%c0_5, %c0_6] : memref<8x192xbf16, #tpu.memory_space<vmem>>, vector<8x192xbf16>
    %c0_7 = arith.constant 0 : index
    %c0_8 = arith.constant 0 : index
    %11 = vector.load %arg6[%c0_7, %c0_8] : memref<688x32xbf16, #tpu.memory_space<vmem>>, vector<192x32xbf16>
    %cst_9 = arith.constant dense<0.000000e+00> : vector<8x32xf32>
    %12 = tpu.matmul %10, %11, %cst_9 {dimension_numbers = #tpu.dot_dimension_numbers<[1], [0], [0], [1], [0, 0, 1, 1], [], []>} : vector<8x192xbf16>, vector<192x32xbf16>, vector<8x32xf32> -> vector<8x32xf32>
    %13 = vector.extract_strided_slice %0 {offsets = [0, 0], sizes = [1, 32], strides = [1, 1]} : vector<12x128xf32> to vector<1x32xf32>
    %14 = vector.broadcast %13 : vector<1x32xf32> to vector<8x32xf32>
    %15 = arith.addf %12, %14 : vector<8x32xf32>
    %cst_10 = arith.constant 5.65685415 : f32
    %16 = vector.broadcast %cst_10 : f32 to vector<8x32xf32>
    %17 = arith.mulf %15, %16 : vector<8x32xf32>
    %18 = arith.truncf %17 : vector<8x32xf32> to vector<8x32xbf16>
    %19 = arith.extf %18 : vector<8x32xbf16> to vector<8x32xf32>
    %c0_11 = arith.constant 0 : index
    %c0_12 = arith.constant 0 : index
    %20 = vector.load %arg2[%c0_11, %c0_12] : memref<2x16xf32, #tpu.memory_space<vmem>>, vector<2x16xf32>
    %21 = arith.truncf %20 : vector<2x16xf32> to vector<2x16xbf16>
    %c192 = arith.constant 192 : index
    %c0_13 = arith.constant 0 : index
    %22 = vector.load %arg6[%c192, %c0_13] : memref<688x32xbf16, #tpu.memory_space<vmem>>, vector<16x32xbf16>
    %cst_14 = arith.constant dense<0.000000e+00> : vector<2x32xf32>
    %23 = tpu.matmul %21, %22, %cst_14 {dimension_numbers = #tpu.dot_dimension_numbers<[1], [0], [0], [1], [0, 0, 1, 1], [], []>} : vector<2x16xbf16>, vector<16x32xbf16>, vector<2x32xf32> -> vector<2x32xf32>
    %24 = vector.extract_strided_slice %0 {offsets = [1, 0], sizes = [1, 32], strides = [1, 1]} : vector<12x128xf32> to vector<1x32xf32>
    %25 = vector.broadcast %24 : vector<1x32xf32> to vector<2x32xf32>
    %26 = arith.addf %23, %25 : vector<2x32xf32>
    %27 = arith.truncf %26 : vector<2x32xf32> to vector<2x32xbf16>
    %28 = arith.extf %27 : vector<2x32xbf16> to vector<2x32xf32>
    %29 = arith.truncf %8 : vector<16x128xf32> to vector<16x128xbf16>
    %c208 = arith.constant 208 : index
    %c0_15 = arith.constant 0 : index
    %30 = vector.load %arg6[%c208, %c0_15] : memref<688x32xbf16, #tpu.memory_space<vmem>>, vector<128x32xbf16>
    %cst_16 = arith.constant dense<0.000000e+00> : vector<16x32xf32>
    %31 = tpu.matmul %29, %30, %cst_16 {dimension_numbers = #tpu.dot_dimension_numbers<[1], [0], [0], [1], [0, 0, 1, 1], [], []>} : vector<16x128xbf16>, vector<128x32xbf16>, vector<16x32xf32> -> vector<16x32xf32>
    %32 = vector.extract_strided_slice %0 {offsets = [2, 0], sizes = [1, 32], strides = [1, 1]} : vector<12x128xf32> to vector<1x32xf32>
    %33 = vector.broadcast %32 : vector<1x32xf32> to vector<16x32xf32>
    %34 = arith.addf %31, %33 : vector<16x32xf32>
    %35 = arith.truncf %34 : vector<16x32xf32> to vector<16x32xbf16>
    %c336 = arith.constant 336 : index
    %c0_17 = arith.constant 0 : index
    %36 = vector.load %arg6[%c336, %c0_17] : memref<688x32xbf16, #tpu.memory_space<vmem>>, vector<32x32xbf16>
    %cst_18 = arith.constant dense<0.000000e+00> : vector<16x32xf32>
    %37 = tpu.matmul %35, %36, %cst_18 {dimension_numbers = #tpu.dot_dimension_numbers<[1], [0], [0], [1], [0, 0, 1, 1], [], []>} : vector<16x32xbf16>, vector<32x32xbf16>, vector<16x32xf32> -> vector<16x32xf32>
    %c0_19 = arith.constant 0 : index
    %c0_20 = arith.constant 0 : index
    %38 = vector.load %arg4[%c0_19, %c0_20] : memref<16x32xf32, #tpu.memory_space<vmem>>, vector<16x32xf32>
    %39 = arith.truncf %38 : vector<16x32xf32> to vector<16x32xbf16>
    %c368 = arith.constant 368 : index
    %c0_21 = arith.constant 0 : index
    %40 = vector.load %arg6[%c368, %c0_21] : memref<688x32xbf16, #tpu.memory_space<vmem>>, vector<32x32xbf16>
    %cst_22 = arith.constant dense<0.000000e+00> : vector<16x32xf32>
    %41 = tpu.matmul %39, %40, %cst_22 {dimension_numbers = #tpu.dot_dimension_numbers<[1], [0], [0], [1], [0, 0, 1, 1], [], []>} : vector<16x32xbf16>, vector<32x32xbf16>, vector<16x32xf32> -> vector<16x32xf32>
    %42 = arith.addf %37, %41 : vector<16x32xf32>
    %43 = vector.extract_strided_slice %0 {offsets = [3, 0], sizes = [1, 32], strides = [1, 1]} : vector<12x128xf32> to vector<1x32xf32>
    %44 = vector.broadcast %43 : vector<1x32xf32> to vector<16x32xf32>
    %45 = arith.addf %42, %44 : vector<16x32xf32>
    %46 = arith.negf %45 : vector<16x32xf32>
    %47 = math.exp %46 : vector<16x32xf32>
    %cst_23 = arith.constant 1.000000e+00 : f32
    %48 = vector.broadcast %cst_23 : f32 to vector<16x32xf32>
    %49 = arith.addf %48, %47 : vector<16x32xf32>
    %50 = arith.divf %48, %49 : vector<16x32xf32>
    %51 = arith.mulf %45, %50 : vector<16x32xf32>
    %52 = arith.truncf %51 : vector<16x32xf32> to vector<16x32xbf16>
    %c400 = arith.constant 400 : index
    %c0_24 = arith.constant 0 : index
    %53 = vector.load %arg6[%c400, %c0_24] : memref<688x32xbf16, #tpu.memory_space<vmem>>, vector<32x32xbf16>
    %cst_25 = arith.constant dense<0.000000e+00> : vector<16x32xf32>
    %54 = tpu.matmul %52, %53, %cst_25 {dimension_numbers = #tpu.dot_dimension_numbers<[1], [0], [0], [1], [0, 0, 1, 1], [], []>} : vector<16x32xbf16>, vector<32x32xbf16>, vector<16x32xf32> -> vector<16x32xf32>
    %55 = vector.extract_strided_slice %0 {offsets = [4, 0], sizes = [1, 32], strides = [1, 1]} : vector<12x128xf32> to vector<1x32xf32>
    %56 = vector.broadcast %55 : vector<1x32xf32> to vector<16x32xf32>
    %57 = arith.addf %54, %56 : vector<16x32xf32>
    %c0_26 = arith.constant 0 : index
    %c0_27 = arith.constant 0 : index
    %58 = vector.load %arg10[%c0_26, %c0_27] : memref<42x32xf32, #tpu.memory_space<vmem>>, vector<8x32xf32>
    tpu.vector_store %arg10[%c0_26, %c0_27], %19 {strides = array<i32>} : memref<42x32xf32, #tpu.memory_space<vmem>>, vector<8x32xf32>,
    %c0_28 = arith.constant 0 : index
    %c0_29 = arith.constant 0 : index
    %59 = vector.load %arg1[%c0_28, %c0_29] : memref<16x32xf32, #tpu.memory_space<vmem>>, vector<16x32xf32>
    %c8 = arith.constant 8 : index
    %c0_30 = arith.constant 0 : index
    %60 = vector.load %arg10[%c8, %c0_30] : memref<42x32xf32, #tpu.memory_space<vmem>>, vector<16x32xf32>
    tpu.vector_store %arg10[%c8, %c0_30], %59 {strides = array<i32>} : memref<42x32xf32, #tpu.memory_space<vmem>>, vector<16x32xf32>,
    %c24 = arith.constant 24 : index
    %c0_31 = arith.constant 0 : index
    %61 = vector.load %arg10[%c24, %c0_31] : memref<42x32xf32, #tpu.memory_space<vmem>>, vector<16x32xf32>
    tpu.vector_store %arg10[%c24, %c0_31], %57 {strides = array<i32>} : memref<42x32xf32, #tpu.memory_space<vmem>>, vector<16x32xf32>,
    %c40 = arith.constant 40 : index
    %c0_32 = arith.constant 0 : index
    %62 = vector.load %arg10[%c40, %c0_32] : memref<42x32xf32, #tpu.memory_space<vmem>>, vector<2x32xf32>
    tpu.vector_store %arg10[%c40, %c0_32], %28 {strides = array<i32>} : memref<42x32xf32, #tpu.memory_space<vmem>>, vector<2x32xf32>,
    %c0_33 = arith.constant 0 : index
    %c0_34 = arith.constant 0 : index
    %63 = vector.load %arg10[%c0_33, %c0_34] : memref<42x32xf32, #tpu.memory_space<vmem>>, vector<42x32xf32>
    %64 = arith.truncf %63 : vector<42x32xf32> to vector<42x32xbf16>
    %c432 = arith.constant 432 : index
    %c0_35 = arith.constant 0 : index
    %65 = vector.load %arg6[%c432, %c0_35] : memref<688x32xbf16, #tpu.memory_space<vmem>>, vector<32x32xbf16>
    %cst_36 = arith.constant dense<0.000000e+00> : vector<42x32xf32>
    %66 = tpu.matmul %64, %65, %cst_36 {dimension_numbers = #tpu.dot_dimension_numbers<[1], [0], [0], [1], [0, 0, 1, 1], [], []>} : vector<42x32xbf16>, vector<32x32xbf16>, vector<42x32xf32> -> vector<42x32xf32>
    %67 = vector.extract_strided_slice %0 {offsets = [5, 0], sizes = [1, 32], strides = [1, 1]} : vector<12x128xf32> to vector<1x32xf32>
    %68 = vector.broadcast %67 : vector<1x32xf32> to vector<42x32xf32>
    %69 = arith.addf %66, %68 : vector<42x32xf32>
    %c464 = arith.constant 464 : index
    %c0_37 = arith.constant 0 : index
    %70 = vector.load %arg6[%c464, %c0_37] : memref<688x32xbf16, #tpu.memory_space<vmem>>, vector<32x32xbf16>
    %cst_38 = arith.constant dense<0.000000e+00> : vector<42x32xf32>
    %71 = tpu.matmul %64, %70, %cst_38 {dimension_numbers = #tpu.dot_dimension_numbers<[1], [0], [0], [1], [0, 0, 1, 1], [], []>} : vector<42x32xbf16>, vector<32x32xbf16>, vector<42x32xf32> -> vector<42x32xf32>
    %72 = vector.extract_strided_slice %0 {offsets = [6, 0], sizes = [1, 32], strides = [1, 1]} : vector<12x128xf32> to vector<1x32xf32>
    %73 = vector.broadcast %72 : vector<1x32xf32> to vector<42x32xf32>
    %74 = arith.addf %71, %73 : vector<42x32xf32>
    %c496 = arith.constant 496 : index
    %c0_39 = arith.constant 0 : index
    %75 = vector.load %arg6[%c496, %c0_39] : memref<688x32xbf16, #tpu.memory_space<vmem>>, vector<32x32xbf16>
    %cst_40 = arith.constant dense<0.000000e+00> : vector<42x32xf32>
    %76 = tpu.matmul %64, %75, %cst_40 {dimension_numbers = #tpu.dot_dimension_numbers<[1], [0], [0], [1], [0, 0, 1, 1], [], []>} : vector<42x32xbf16>, vector<32x32xbf16>, vector<42x32xf32> -> vector<42x32xf32>
    %77 = vector.extract_strided_slice %0 {offsets = [7, 0], sizes = [1, 32], strides = [1, 1]} : vector<12x128xf32> to vector<1x32xf32>
    %78 = vector.broadcast %77 : vector<1x32xf32> to vector<42x32xf32>
    %79 = arith.addf %76, %78 : vector<42x32xf32>
    %80 = arith.truncf %69 : vector<42x32xf32> to vector<42x32xbf16>
    %81 = arith.truncf %74 : vector<42x32xf32> to vector<42x32xbf16>
    %cst_41 = arith.constant dense<0.000000e+00> : vector<42x42xf32>
    %82 = tpu.matmul %80, %81, %cst_41 {dimension_numbers = #tpu.dot_dimension_numbers<[1], [1], [0], [0], [0, 0, 1, 0], [], []>} : vector<42x32xbf16>, vector<42x32xbf16>, vector<42x42xf32> -> vector<42x42xf32>
    %cst_42 = arith.constant 0.176776692 : f32
    %83 = vector.broadcast %cst_42 : f32 to vector<42x42xf32>
    %84 = arith.mulf %82, %83 : vector<42x42xf32>
    %c0_43 = arith.constant 0 : index
    %c0_44 = arith.constant 0 : index
    %85 = vector.load %arg5[%c0_43, %c0_44] : memref<42x42xf32, #tpu.memory_space<vmem>>, vector<42x42xf32>
    %86 = arith.addf %84, %85 : vector<42x42xf32>
    %cst_45 = arith.constant dense<0xFF800000> : vector<42xf32>
    %87 = vector.multi_reduction <maximumf>, %86, %cst_45 [1] : vector<42x42xf32> to vector<42xf32>
    %88 = vector.shape_cast %87 : vector<42xf32> to vector<42x1xf32>
    %89 = vector.broadcast %88 : vector<42x1xf32> to vector<42x42xf32>
    %90 = arith.subf %86, %89 : vector<42x42xf32>
    %91 = math.exp %90 : vector<42x42xf32>
    %cst_46 = arith.constant dense<0.000000e+00> : vector<42xf32>
    %92 = vector.multi_reduction <add>, %91, %cst_46 [1] : vector<42x42xf32> to vector<42xf32>
    %93 = vector.shape_cast %92 : vector<42xf32> to vector<42x1xf32>
    %94 = tpu.reciprocal %93 {approx = true} : vector<42x1xf32> -> vector<42x1xf32>
    %95 = vector.broadcast %94 : vector<42x1xf32> to vector<42x42xf32>
    %96 = arith.mulf %91, %95 : vector<42x42xf32>
    %97 = arith.truncf %96 : vector<42x42xf32> to vector<42x42xbf16>
    %98 = arith.truncf %79 : vector<42x32xf32> to vector<42x32xbf16>
    %cst_47 = arith.constant dense<0.000000e+00> : vector<42x32xf32>
    %99 = tpu.matmul %97, %98, %cst_47 {dimension_numbers = #tpu.dot_dimension_numbers<[1], [0], [0], [1], [0, 0, 1, 1], [], []>} : vector<42x42xbf16>, vector<42x32xbf16>, vector<42x32xf32> -> vector<42x32xf32>
    %100 = arith.truncf %99 : vector<42x32xf32> to vector<42x32xbf16>
    %c528 = arith.constant 528 : index
    %c0_48 = arith.constant 0 : index
    %101 = vector.load %arg6[%c528, %c0_48] : memref<688x32xbf16, #tpu.memory_space<vmem>>, vector<32x32xbf16>
    %cst_49 = arith.constant dense<0.000000e+00> : vector<42x32xf32>
    %102 = tpu.matmul %100, %101, %cst_49 {dimension_numbers = #tpu.dot_dimension_numbers<[1], [0], [0], [1], [0, 0, 1, 1], [], []>} : vector<42x32xbf16>, vector<32x32xbf16>, vector<42x32xf32> -> vector<42x32xf32>
    %103 = arith.addf %63, %102 : vector<42x32xf32>
    %104 = vector.extract_strided_slice %0 {offsets = [8, 0], sizes = [1, 32], strides = [1, 1]} : vector<12x128xf32> to vector<1x32xf32>
    %105 = vector.broadcast %104 : vector<1x32xf32> to vector<42x32xf32>
    %106 = arith.addf %103, %105 : vector<42x32xf32>
    %107 = arith.truncf %106 : vector<42x32xf32> to vector<42x32xbf16>
    %c0_50 = arith.constant 0 : index
    %c0_51 = arith.constant 0 : index
    %108 = vector.load %arg7[%c0_50, %c0_51] : memref<64x128xbf16, #tpu.memory_space<vmem>>, vector<32x128xbf16>
    %cst_52 = arith.constant dense<0.000000e+00> : vector<42x128xf32>
    %109 = tpu.matmul %107, %108, %cst_52 {dimension_numbers = #tpu.dot_dimension_numbers<[1], [0], [0], [1], [0, 0, 1, 1], [], []>} : vector<42x32xbf16>, vector<32x128xbf16>, vector<42x128xf32> -> vector<42x128xf32>
    %110 = vector.extract_strided_slice %0 {offsets = [9, 0], sizes = [1, 128], strides = [1, 1]} : vector<12x128xf32> to vector<1x128xf32>
    %111 = vector.broadcast %110 : vector<1x128xf32> to vector<42x128xf32>
    %112 = arith.addf %109, %111 : vector<42x128xf32>
    %113 = arith.negf %112 : vector<42x128xf32>
    %114 = math.exp %113 : vector<42x128xf32>
    %cst_53 = arith.constant 1.000000e+00 : f32
    %115 = vector.broadcast %cst_53 : f32 to vector<42x128xf32>
    %116 = arith.addf %115, %114 : vector<42x128xf32>
    %117 = arith.divf %115, %116 : vector<42x128xf32>
    %118 = arith.mulf %112, %117 : vector<42x128xf32>
    %119 = arith.truncf %118 : vector<42x128xf32> to vector<42x128xbf16>
    %c560 = arith.constant 560 : index
    %c0_54 = arith.constant 0 : index
    %120 = vector.load %arg6[%c560, %c0_54] : memref<688x32xbf16, #tpu.memory_space<vmem>>, vector<128x32xbf16>
    %cst_55 = arith.constant dense<0.000000e+00> : vector<42x32xf32>
    %121 = tpu.matmul %119, %120, %cst_55 {dimension_numbers = #tpu.dot_dimension_numbers<[1], [0], [0], [1], [0, 0, 1, 1], [], []>} : vector<42x128xbf16>, vector<128x32xbf16>, vector<42x32xf32> -> vector<42x32xf32>
    %122 = arith.addf %106, %121 : vector<42x32xf32>
    %123 = vector.extract_strided_slice %0 {offsets = [10, 0], sizes = [1, 32], strides = [1, 1]} : vector<12x128xf32> to vector<1x32xf32>
    %124 = vector.broadcast %123 : vector<1x32xf32> to vector<42x32xf32>
    %125 = arith.addf %122, %124 : vector<42x32xf32>
    %126 = vector.extract_strided_slice %125 {offsets = [24, 0], sizes = [16, 32], strides = [1, 1]} : vector<42x32xf32> to vector<16x32xf32>
    %127 = arith.truncf %126 : vector<16x32xf32> to vector<16x32xbf16>
    %c32_56 = arith.constant 32 : index
    %c0_57 = arith.constant 0 : index
    %128 = vector.load %arg7[%c32_56, %c0_57] : memref<64x128xbf16, #tpu.memory_space<vmem>>, vector<32x128xbf16>
    %cst_58 = arith.constant dense<0.000000e+00> : vector<16x128xf32>
    %129 = tpu.matmul %127, %128, %cst_58 {dimension_numbers = #tpu.dot_dimension_numbers<[1], [0], [0], [1], [0, 0, 1, 1], [], []>} : vector<16x32xbf16>, vector<32x128xbf16>, vector<16x128xf32> -> vector<16x128xf32>
    %130 = vector.extract_strided_slice %0 {offsets = [11, 0], sizes = [1, 128], strides = [1, 1]} : vector<12x128xf32> to vector<1x128xf32>
    %131 = vector.broadcast %130 : vector<1x128xf32> to vector<16x128xf32>
    %132 = arith.addf %129, %131 : vector<16x128xf32>
    %133 = arith.subf %132, %9 : vector<16x128xf32>
    %134 = arith.mulf %133, %133 : vector<16x128xf32>
    %c0_59 = arith.constant 0 : index
    %c0_60 = arith.constant 0 : index
    %135 = vector.load %arg9[%c0_59, %c0_60] : memref<16x128xf32, #tpu.memory_space<vmem>>, vector<16x128xf32>
    tpu.vector_store %arg9[%c0_59, %c0_60], %134 {strides = array<i32>} : memref<16x128xf32, #tpu.memory_space<vmem>>, vector<16x128xf32>,
    return
  }
}

</mosaic_0001>

<llo_original>
// kernel: tpu_custom_call.1
$region0: #{tpu_custom_call.1}
  #allocation0 [shape = 'u32[]', space=smem, size = 0x4, offset = 0x4, fixed_abs, tag = 'smem constant byte address 0x4 - core index']
  #allocation1 [shape = 'u32[72,128]{1,0:T(1,128)}', space=vmem, size = 0x9000, scoped, tag = 'internal scratch']
  #allocation2 [shape = 'f32[42,32]{1,0:T(8,128)}', space=vmem, size = 0x6000, scoped, tag = 'scratch operand']
  %s0 = inlined_call_operand.vmem [shape: bf16[8,192], index: 0, kind: input, shape index: {}]
  %s1 = inlined_call_operand.vmem [shape: f32[16,32], index: 1, kind: input, shape index: {}]
  %s2 = inlined_call_operand.vmem [shape: f32[2,16], index: 2, kind: input, shape index: {}]
  %s3 = inlined_call_operand.vmem [shape: f32[48,128], index: 3, kind: input, shape index: {}]
  %s4 = inlined_call_operand.vmem [shape: f32[16,32], index: 4, kind: input, shape index: {}]
  %s5 = inlined_call_operand.vmem [shape: f32[42,42], index: 5, kind: input, shape index: {}]
  %s6 = inlined_call_operand.vmem [shape: bf16[688,32], index: 6, kind: input, shape index: {}]
  %s7 = inlined_call_operand.vmem [shape: bf16[64,128], index: 7, kind: input, shape index: {}]
  %s8 = inlined_call_operand.vmem [shape: f32[12,128], index: 8, kind: input, shape index: {}]
  %s9 = inlined_call_operand.hbm [shape: f32[16,128], index: 9, kind: output, shape index: {}]
  %s10 = sld [smem:[#allocation0]]
  $region46: #{tpu_custom_call.1} parent=0
    _
  %s12 = ssub.s32 1, %s10
  %s13 = scalar_select 0, %s12, %s10
  $region1: #{tpu_custom_call.1} parent=0
    #allocation3 [shape = 'u8[8192]{0}', space=vmem, size = 0x2000, scoped, tag = 'output window, operand 0, single buffered']
    #allocation4 [shape = 's32[1]{0}', space=sflag, size = 0x4, scoped, tag = 'scoped memory for tpu_custom_call.1']
    %14 = vsyncpa [#allocation4], 0
    // Predicated region
    $region2: #{tpu_custom_call.1} parent=1 // pred_check
      _
    $region3: #{tpu_custom_call.1} parent=1 // pred_check_branch
      %16 = sbr.rel (0) target = $region5
    $region4: #{tpu_custom_call.1} parent=1 // pred_region
      _
    $region5: #{tpu_custom_call.1} parent=1 // pred_fallthru
      _
    // Predicated region
    $region6: #{tpu_custom_call.1} parent=1 // pred_check
      _
    $region7: #{tpu_custom_call.1} parent=1 // pred_check_branch
      %18 = sbr.rel (0) target = $region9
    $region8: #{tpu_custom_call.1} parent=1 // pred_region
      _
    $region9: #{tpu_custom_call.1} parent=1 // pred_fallthru
      _
    // Predicated region
    $region10: #{tpu_custom_call.1} parent=1 // pred_check
      _
    $region11: #{tpu_custom_call.1} parent=1 // pred_check_branch
      %20 = sbr.rel (0) target = $region13
    $region12: #{tpu_custom_call.1} parent=1 // pred_region
      _
    $region13: #{tpu_custom_call.1} parent=1 // pred_fallthru
      _
    // Predicated region
    $region14: #{tpu_custom_call.1} parent=1 // pred_check
      _
    $region15: #{tpu_custom_call.1} parent=1 // pred_check_branch
      %22 = sbr.rel (0) target = $region17
    $region16: #{tpu_custom_call.1} parent=1 // pred_region
      _
    $region17: #{tpu_custom_call.1} parent=1 // pred_fallthru
      _
    // Predicated region
    $region18: #{tpu_custom_call.1} parent=1 // pred_check
      _
    $region19: #{tpu_custom_call.1} parent=1 // pred_check_branch
      %24 = sbr.rel (0) target = $region21
    $region20: #{tpu_custom_call.1} parent=1 // pred_region
      _
    $region21: #{tpu_custom_call.1} parent=1 // pred_fallthru
      _
    // Predicated region
    $region22: #{tpu_custom_call.1} parent=1 // pred_check
      _
    $region23: #{tpu_custom_call.1} parent=1 // pred_check_branch
      %26 = sbr.rel (0) target = $region25
    $region24: #{tpu_custom_call.1} parent=1 // pred_region
      _
    $region25: #{tpu_custom_call.1} parent=1 // pred_fallthru
      _
    // Predicated region
    $region26: #{tpu_custom_call.1} parent=1 // pred_check
      _
    $region27: #{tpu_custom_call.1} parent=1 // pred_check_branch
      %28 = sbr.rel (0) target = $region29
    $region28: #{tpu_custom_call.1} parent=1 // pred_region
      _
    $region29: #{tpu_custom_call.1} parent=1 // pred_fallthru
      _
    // Predicated region
    $region30: #{tpu_custom_call.1} parent=1 // pred_check
      _
    $region31: #{tpu_custom_call.1} parent=1 // pred_check_branch
      %30 = sbr.rel (0) target = $region33
    $region32: #{tpu_custom_call.1} parent=1 // pred_region
      _
    $region33: #{tpu_custom_call.1} parent=1 // pred_fallthru
      _
    // Predicated region
    $region34: #{tpu_custom_call.1} parent=1 // pred_check
      _
    $region35: #{tpu_custom_call.1} parent=1 // pred_check_branch
      %32 = sbr.rel (0) target = $region37
    $region36: #{tpu_custom_call.1} parent=1 // pred_region
      _
    $region37: #{tpu_custom_call.1} parent=1 // pred_fallthru
      _
    %v34 = vld [vmem:[%s8] sm:$0xff]
    %v35 = vld [vmem:[%s8 + $0x8] sm:$0xf]
    %v36 = vld [vmem:[%s3] sm:$0xff]
    %v37 = vld [vmem:[%s3 + $0x8] sm:$0xff]
    %v38 = vld [vmem:[%s3 + $0x10] sm:$0xff]
    %v39 = vld [vmem:[%s3 + $0x18] sm:$0xff]
    %v40 = vld [vmem:[%s3 + $0x20] sm:$0xff]
    %v41 = vld [vmem:[%s3 + $0x28] sm:$0xff]
    %v42 = vmul.f32 %v40, %v38
    %v43 = vmul.f32 %v41, %v39
    %v44 = vsub.f32 1.0, %v40
    %v45 = vsub.f32 1.0, %v41
    %v46 = vmul.f32 %v44, %v36
    %v47 = vmul.f32 %v45, %v37
    %v48 = vadd.f32 %v42, %v46
    %v49 = vadd.f32 %v43, %v47
    %v50 = vsub.f32 %v38, %v36
    %v51 = vsub.f32 %v39, %v37
    %v52 = vld [vmem:[%s0] sm:$0xff]
    %v53 = vld [vmem:[%s6] sm:$0xf]
    %v54 = vld [vmem:[%s6 + $0x4] sm:$0xf]
    %v55 = vld [vmem:[%s6 + $0x8] sm:$0xf]
    %v56 = vld [vmem:[%s6 + $0xc] sm:$0xf]
    %v57 = vld [vmem:[%s6 + $0x10] sm:$0xf]
    %v58 = vld [vmem:[%s6 + $0x14] sm:$0xf]
    %v59 = vld [vmem:[%s6 + $0x18] sm:$0xf]
    %v60 = vld [vmem:[%s6 + $0x1c] sm:$0xf]
    %v61 = vld [vmem:[%s6 + $0x20] sm:$0xf]
    %v62 = vld [vmem:[%s6 + $0x24] sm:$0xf]
    %v63 = vld [vmem:[%s6 + $0x28] sm:$0xf]
    %v64 = vld [vmem:[%s6 + $0x2c] sm:$0xf]
    %v65 = vld [vmem:[%s6 + $0x30] sm:$0xf]
    %v66 = vld [vmem:[%s6 + $0x34] sm:$0xf]
    %v67 = vld [vmem:[%s6 + $0x38] sm:$0xf]
    %v68 = vld [vmem:[%s6 + $0x3c] sm:$0xf]
    %v69 = vld [vmem:[%s6 + $0x40] sm:$0xf]
    %v70 = vld [vmem:[%s6 + $0x44] sm:$0xf]
    %v71 = vld [vmem:[%s6 + $0x48] sm:$0xf]
    %v72 = vld [vmem:[%s6 + $0x4c] sm:$0xf]
    %v73 = vld [vmem:[%s6 + $0x50] sm:$0xf]
    %v74 = vld [vmem:[%s6 + $0x54] sm:$0xf]
    %v75 = vld [vmem:[%s6 + $0x58] sm:$0xf]
    %v76 = vld [vmem:[%s6 + $0x5c] sm:$0xf]
    %v77 = vperm.slane %v34, 0
    %v79 = vunpack.c.l.b16 %v52
    %v80 = vunpack.c.h.b16 %v52
    %v81 = vpack.c.b16 %v79, %v79
    %v82 = vpack.c.b16 %v80, %v80
    %v108 = vunpack.c.l.b16 %v53
    %v109 = vunpack.c.l.b16 %v54
    %v110 = vunpack.c.l.b16 %v55
    %v111 = vunpack.c.l.b16 %v56
    %v112 = vunpack.c.l.b16 %v57
    %v113 = vunpack.c.l.b16 %v58
    %v114 = vunpack.c.l.b16 %v59
    %v115 = vunpack.c.l.b16 %v60
    %v116 = vunpack.c.l.b16 %v61
    %v117 = vunpack.c.l.b16 %v62
    %v118 = vunpack.c.l.b16 %v63
    %v119 = vunpack.c.l.b16 %v64
    %v120 = vunpack.c.l.b16 %v65
    %v121 = vunpack.c.l.b16 %v66
    %v122 = vunpack.c.l.b16 %v67
    %v123 = vunpack.c.l.b16 %v68
    %v124 = vunpack.c.l.b16 %v69
    %v125 = vunpack.c.l.b16 %v70
    %v126 = vunpack.c.l.b16 %v71
    %v127 = vunpack.c.l.b16 %v72
    %v128 = vunpack.c.l.b16 %v73
    %v129 = vunpack.c.l.b16 %v74
    %v130 = vunpack.c.l.b16 %v75
    %v131 = vunpack.c.l.b16 %v76
    %v132 = vpack.c.b16 %v109, %v108
    %v133 = vpack.c.b16 %v111, %v110
    %v134 = vpack.c.b16 %v113, %v112
    %v135 = vpack.c.b16 %v115, %v114
    %v136 = vpack.c.b16 %v117, %v116
    %v137 = vpack.c.b16 %v119, %v118
    %v138 = vpack.c.b16 %v121, %v120
    %v139 = vpack.c.b16 %v123, %v122
    %v140 = vpack.c.b16 %v125, %v124
    %v141 = vpack.c.b16 %v127, %v126
    %v142 = vpack.c.b16 %v129, %v128
    %v143 = vpack.c.b16 %v131, %v130
    %vm156 = vcmask 523264
    %v158 = vsel %vm156, %v82, 0
    %160 = vmatpush.bf16.msra.mxu0 %v139
    %161 = vmatpush.bf16.msra.mxu0 %v138
    %162 = vmatpush.bf16.msra.mxu0 %v137
    %163 = vmatpush.bf16.msra.mxu0 %v136
    %164 = vmatpush.bf16.msra.mxu0 %v135
    %165 = vmatpush.bf16.msra.mxu0 %v134
    %166 = vmatpush.bf16.msra.mxu0 %v133
    %167 = vmatpush.bf16.msra.mxu0 %v132
    %168 = vmatmul.bf16.gmra.mxu0 %v81
    %v169 = vpop.f32.mrf.mxu0
    %v170 = vadd.f32 %v77, %v169
    %v171 = vpop.f32.mrf.mxu0
    %172 = vdwg.mxu0
    %173 = vmatpush.bf16.msra.mxu0 0
    %174 = vmatpush.bf16.msra.mxu0 0
    %175 = vmatpush.bf16.msra.mxu0 0
    %176 = vmatpush.bf16.msra.mxu0 0
    %177 = vmatpush.bf16.msra.mxu0 %v143
    %178 = vmatpush.bf16.msra.mxu0 %v142
    %179 = vmatpush.bf16.msra.mxu0 %v141
    %180 = vmatpush.bf16.msra.mxu0 %v140
    %181 = vmatmul.bf16.gmra.mxu0 %v158
    %v182 = vpop.f32.mrf.mxu0
    %v183 = vadd.f32 %v170, %v182
    %v184 = vpop.f32.mrf.mxu0
    %185 = vdwg.mxu0
    %v186 = vmul.f32 %v183, 5.656854
    %v187 = vpack.c.bf16 %v186, %v186
    %v188 = vunpack.c.l.bf16 %v187
    %v189 = vld [vmem:[%s2] sm:$0x3]
    %v190 = vpack.c.bf16 %v189, %v189
    %v191 = vld [vmem:[%s6 + $0x60] sm:$0xf]
    %v192 = vld [vmem:[%s6 + $0x64] sm:$0xf]
    %v193 = vperm.slane %v34, 1
    %v196 = vunpack.c.l.b16 %v191
    %v197 = vunpack.c.l.b16 %v192
    %v198 = vpack.c.b16 %v197, %v196
    %vm200 = vcmask 130048
    %v202 = vsel %vm200, %v190, 0
    %204 = vmatpush.bf16.msra.mxu0 0
    %205 = vmatpush.bf16.msra.mxu0 0
    %206 = vmatpush.bf16.msra.mxu0 0
    %207 = vmatpush.bf16.msra.mxu0 0
    %208 = vmatpush.bf16.msra.mxu0 0
    %209 = vmatpush.bf16.msra.mxu0 0
    %210 = vmatpush.bf16.msra.mxu0 0
    %211 = vmatpush.bf16.msra.mxu0 %v198
    %212 = vmatmul.bf16.gmra.mxu0 %v202
    %v213 = vpop.f32.mrf.mxu0
    %v214 = vadd.f32 %v193, %v213
    %v215 = vpop.f32.mrf.mxu0
    %216 = vdwg.mxu0
    %v217 = vpack.c.bf16 %v214, %v214
    %v218 = vunpack.c.l.bf16 %v217
    %v219 = vpack.c.bf16 %v49, %v48
    %v220 = vld [vmem:[%s6 + $0x68] sm:$0xf]
    %v221 = vld [vmem:[%s6 + $0x6c] sm:$0xf]
    %v222 = vld [vmem:[%s6 + $0x70] sm:$0xf]
    %v223 = vld [vmem:[%s6 + $0x74] sm:$0xf]
    %v224 = vld [vmem:[%s6 + $0x78] sm:$0xf]
    %v225 = vld [vmem:[%s6 + $0x7c] sm:$0xf]
    %v226 = vld [vmem:[%s6 + $0x80] sm:$0xf]
    %v227 = vld [vmem:[%s6 + $0x84] sm:$0xf]
    %v228 = vld [vmem:[%s6 + $0x88] sm:$0xf]
    %v229 = vld [vmem:[%s6 + $0x8c] sm:$0xf]
    %v230 = vld [vmem:[%s6 + $0x90] sm:$0xf]
    %v231 = vld [vmem:[%s6 + $0x94] sm:$0xf]
    %v232 = vld [vmem:[%s6 + $0x98] sm:$0xf]
    %v233 = vld [vmem:[%s6 + $0x9c] sm:$0xf]
    %v234 = vld [vmem:[%s6 + $0xa0] sm:$0xf]
    %v235 = vld [vmem:[%s6 + $0xa4] sm:$0xf]
    %v236 = vperm.slane %v34, 2
    %v253 = vunpack.c.l.b16 %v220
    %v254 = vunpack.c.l.b16 %v221
    %v255 = vunpack.c.l.b16 %v222
    %v256 = vunpack.c.l.b16 %v223
    %v257 = vunpack.c.l.b16 %v224
    %v258 = vunpack.c.l.b16 %v225
    %v259 = vunpack.c.l.b16 %v226
    %v260 = vunpack.c.l.b16 %v227
    %v261 = vunpack.c.l.b16 %v228
    %v262 = vunpack.c.l.b16 %v229
    %v263 = vunpack.c.l.b16 %v230
    %v264 = vunpack.c.l.b16 %v231
    %v265 = vunpack.c.l.b16 %v232
    %v266 = vunpack.c.l.b16 %v233
    %v267 = vunpack.c.l.b16 %v234
    %v268 = vunpack.c.l.b16 %v235
    %v269 = vpack.c.b16 %v254, %v253
    %v270 = vpack.c.b16 %v256, %v255
    %v271 = vpack.c.b16 %v258, %v257
    %v272 = vpack.c.b16 %v260, %v259
    %v273 = vpack.c.b16 %v262, %v261
    %v274 = vpack.c.b16 %v264, %v263
    %v275 = vpack.c.b16 %v266, %v265
    %v276 = vpack.c.b16 %v268, %v267
    %285 = vmatpush.bf16.msra.mxu0 %v276
    %286 = vmatpush.bf16.msra.mxu0 %v275
    %287 = vmatpush.bf16.msra.mxu0 %v274
    %288 = vmatpush.bf16.msra.mxu0 %v273
    %289 = vmatpush.bf16.msra.mxu0 %v272
    %290 = vmatpush.bf16.msra.mxu0 %v271
    %291 = vmatpush.bf16.msra.mxu0 %v270
    %292 = vmatpush.bf16.msra.mxu0 %v269
    %293 = vmatmul.bf16.gmra.mxu0 %v219
    %v294 = vpop.f32.mrf.mxu0
    %v295 = vadd.f32 %v236, %v294
    %v296 = vpop.f32.mrf.mxu0
    %v297 = vadd.f32 %v236, %v296
    %298 = vdwg.mxu0
    %v299 = vpack.c.bf16 %v297, %v295
    %v300 = vld [vmem:[%s6 + $0xa8] sm:$0xf]
    %v301 = vld [vmem:[%s6 + $0xac] sm:$0xf]
    %v302 = vld [vmem:[%s6 + $0xb0] sm:$0xf]
    %v303 = vld [vmem:[%s6 + $0xb4] sm:$0xf]
    %v304 = vld [vmem:[%s4] sm:$0xff]
    %v305 = vld [vmem:[%s4 + $0x8] sm:$0xff]
    %v306 = vpack.c.bf16 %v305, %v304
    %v307 = vld [vmem:[%s6 + $0xb8] sm:$0xf]
    %v308 = vld [vmem:[%s6 + $0xbc] sm:$0xf]
    %v309 = vld [vmem:[%s6 + $0xc0] sm:$0xf]
    %v310 = vld [vmem:[%s6 + $0xc4] sm:$0xf]
    %v315 = vunpack.c.l.b16 %v307
    %v316 = vunpack.c.l.b16 %v308
    %v317 = vunpack.c.l.b16 %v309
    %v318 = vunpack.c.l.b16 %v310
    %v319 = vpack.c.b16 %v316, %v315
    %v320 = vpack.c.b16 %v318, %v317
    %vm323 = vcmask 261120
    %v325 = vsel %vm323, %v306, 0
    %327 = vmatpush.bf16.msra.mxu0 0
    %328 = vmatpush.bf16.msra.mxu0 0
    %329 = vmatpush.bf16.msra.mxu0 0
    %330 = vmatpush.bf16.msra.mxu0 0
    %331 = vmatpush.bf16.msra.mxu0 0
    %332 = vmatpush.bf16.msra.mxu0 0
    %333 = vmatpush.bf16.msra.mxu0 %v320
    %334 = vmatpush.bf16.msra.mxu0 %v319
    %335 = vmatmul.bf16.gmra.mxu0 %v325
    %v336 = vpop.f32.mrf.mxu0
    %v337 = vadd.f32 0.0, %v336
    %v338 = vpop.f32.mrf.mxu0
    %v339 = vadd.f32 0.0, %v338
    %340 = vdwg.mxu0
    %v345 = vunpack.c.l.b16 %v300
    %v346 = vunpack.c.l.b16 %v301
    %v347 = vunpack.c.l.b16 %v302
    %v348 = vunpack.c.l.b16 %v303
    %v349 = vpack.c.b16 %v346, %v345
    %v350 = vpack.c.b16 %v348, %v347
    %v354 = vsel %vm323, %v299, 0
    %356 = vmatpush.bf16.msra.mxu0 0
    %357 = vmatpush.bf16.msra.mxu0 0
    %358 = vmatpush.bf16.msra.mxu0 0
    %359 = vmatpush.bf16.msra.mxu0 0
    %360 = vmatpush.bf16.msra.mxu0 0
    %361 = vmatpush.bf16.msra.mxu0 0
    %362 = vmatpush.bf16.msra.mxu0 %v350
    %363 = vmatpush.bf16.msra.mxu0 %v349
    %364 = vmatmul.bf16.gmra.mxu0 %v354
    %v365 = vpop.f32.mrf.mxu0
    %v366 = vadd.f32 %v337, %v365
    %v367 = vpop.f32.mrf.mxu0
    %v368 = vadd.f32 %v339, %v367
    %369 = vdwg.mxu0
    %v370 = vperm.slane %v34, 3
    %v371 = vadd.f32 %v366, %v370
    %v372 = vadd.f32 %v368, %v370
    %v373 = vxor.u32 %v371, 2147483648
    %v374 = vxor.u32 %v372, 2147483648
    %v375 = vmul.f32 %v373, 1.442695
    %v376 = vpow.pop %v375
    %v377 = vmul.f32 %v374, 1.442695
    %v378 = vpow.pop %v377
    %v379 = vadd.f32 %v376, 1.0
    %v380 = vadd.f32 %v378, 1.0
    %v381 = vrcp.pop %v379
    %v382 = vmul.f32 %v379, %v381
    %v383 = vsub.f32 1.0, %v382
    %v384 = vmul.f32 %v381, %v383
    %v385 = vadd.f32 %v381, %v384
    %vm386 = vweird.f32 %v379
    %vm387 = vweird.f32 %v381
    %vm388 = vmor %vm386, %vm387
    %v389 = vsel %vm388, %v381, %v385
    %v390 = vand.u32 2147483647, %v379
    %vm391 = vcmp.eq.f32.partialorder %v390, 8.507059e+37
    %v392 = vand.u32 %v379, 2147483648
    %v393 = vor.u32 1.1754944e-38, %v392
    %v394 = vsel %vm391, %v393, %v389
    %v395 = vmul.f32 1.0, %v394
    %v396 = vrcp.pop %v380
    %v397 = vmul.f32 %v380, %v396
    %v398 = vsub.f32 1.0, %v397
    %v399 = vmul.f32 %v396, %v398
    %v400 = vadd.f32 %v396, %v399
    %vm401 = vweird.f32 %v380
    %vm402 = vweird.f32 %v396
    %vm403 = vmor %vm401, %vm402
    %v404 = vsel %vm403, %v396, %v400
    %v405 = vand.u32 2147483647, %v380
    %vm406 = vcmp.eq.f32.partialorder %v405, 8.507059e+37
    %v407 = vand.u32 %v380, 2147483648
    %v408 = vor.u32 1.1754944e-38, %v407
    %v409 = vsel %vm406, %v408, %v404
    %v410 = vmul.f32 1.0, %v409
    %v411 = vmul.f32 %v371, %v395
    %v412 = vmul.f32 %v372, %v410
    %v413 = vpack.c.bf16 %v412, %v411
    %v414 = vld [vmem:[%s6 + $0xc8] sm:$0xf]
    %v415 = vld [vmem:[%s6 + $0xcc] sm:$0xf]
    %v416 = vld [vmem:[%s6 + $0xd0] sm:$0xf]
    %v417 = vld [vmem:[%s6 + $0xd4] sm:$0xf]
    %v418 = vperm.slane %v34, 4
    %v423 = vunpack.c.l.b16 %v414
    %v424 = vunpack.c.l.b16 %v415
    %v425 = vunpack.c.l.b16 %v416
    %v426 = vunpack.c.l.b16 %v417
    %v427 = vpack.c.b16 %v424, %v423
    %v428 = vpack.c.b16 %v426, %v425
    %v432 = vsel %vm323, %v413, 0
    %434 = vmatpush.bf16.msra.mxu0 0
    %435 = vmatpush.bf16.msra.mxu0 0
    %436 = vmatpush.bf16.msra.mxu0 0
    %437 = vmatpush.bf16.msra.mxu0 0
    %438 = vmatpush.bf16.msra.mxu0 0
    %439 = vmatpush.bf16.msra.mxu0 0
    %440 = vmatpush.bf16.msra.mxu0 %v428
    %441 = vmatpush.bf16.msra.mxu0 %v427
    %442 = vmatmul.bf16.gmra.mxu0 %v432
    %v443 = vpop.f32.mrf.mxu0
    %v444 = vadd.f32 %v418, %v443
    %v445 = vpop.f32.mrf.mxu0
    %v446 = vadd.f32 %v418, %v445
    %447 = vdwg.mxu0
    %448 = vst.msk [vmem:[#allocation2] sm:$0xff] %vm323, %v188
    %v449 = vld [vmem:[%s1] sm:$0xff]
    %v450 = vld [vmem:[%s1 + $0x8] sm:$0xff]
    %451 = vst.msk [vmem:[#allocation2 + $0x8] sm:$0xff] %vm323, %v449
    %452 = vst.msk [vmem:[#allocation2 + $0x10] sm:$0xff] %vm323, %v450
    %453 = vst.msk [vmem:[#allocation2 + $0x18] sm:$0xff] %vm323, %v444
    %454 = vst.msk [vmem:[#allocation2 + $0x20] sm:$0xff] %vm323, %v446
    %vm455 = vcmask 254976
    %456 = vst.msk [vmem:[#allocation2 + $0x28] sm:$0x3] %vm455, %v218
    %v457 = vld [vmem:[#allocation2] sm:$0xff]
    %v458 = vld [vmem:[#allocation2 + $0x8] sm:$0xff]
    %v459 = vld [vmem:[#allocation2 + $0x10] sm:$0xff]
    %v460 = vld [vmem:[#allocation2 + $0x18] sm:$0xff]
    %v461 = vld [vmem:[#allocation2 + $0x20] sm:$0xff]
    %v462 = vld [vmem:[#allocation2 + $0x28] sm:$0x3]
    %v463 = vpack.c.bf16 %v458, %v457
    %v464 = vpack.c.bf16 %v460, %v459
    %v465 = vpack.c.bf16 %v462, %v461
    %v466 = vld [vmem:[%s6 + $0xd8] sm:$0xf]
    %v467 = vld [vmem:[%s6 + $0xdc] sm:$0xf]
    %v468 = vld [vmem:[%s6 + $0xe0] sm:$0xf]
    %v469 = vld [vmem:[%s6 + $0xe4] sm:$0xf]
    %v470 = vperm.slane %v34, 5
    %v475 = vunpack.c.l.b16 %v466
    %v476 = vunpack.c.l.b16 %v467
    %v477 = vunpack.c.l.b16 %v468
    %v478 = vunpack.c.l.b16 %v469
    %v479 = vpack.c.b16 %v476, %v475
    %v480 = vpack.c.b16 %v478, %v477
    %v484 = vsel %vm323, %v463, 0
    %v487 = vsel %vm323, %v464, 0
    %v490 = vsel %vm323, %v465, 0
    %492 = vmatpush.bf16.msra.mxu0 0
    %493 = vmatpush.bf16.msra.mxu0 0
    %494 = vmatpush.bf16.msra.mxu0 0
    %495 = vmatpush.bf16.msra.mxu0 0
    %496 = vmatpush.bf16.msra.mxu0 0
    %497 = vmatpush.bf16.msra.mxu0 0
    %498 = vmatpush.bf16.msra.mxu0 %v480
    %499 = vmatpush.bf16.msra.mxu0 %v479
    %500 = vmatmul.bf16.gmra.mxu0 %v484
    %v501 = vpop.f32.mrf.mxu0
    %v502 = vadd.f32 %v470, %v501
    %v503 = vpop.f32.mrf.mxu0
    %v504 = vadd.f32 %v470, %v503
    %505 = vmatmul.bf16.gmra.mxu0 %v487
    %v506 = vpop.f32.mrf.mxu0
    %v507 = vadd.f32 %v470, %v506
    %v508 = vpop.f32.mrf.mxu0
    %v509 = vadd.f32 %v470, %v508
    %510 = vmatmul.bf16.gmra.mxu0 %v490
    %v511 = vpop.f32.mrf.mxu0
    %v512 = vadd.f32 %v470, %v511
    %v513 = vpop.f32.mrf.mxu0
    %v514 = vadd.f32 %v470, %v513
    %515 = vdwg.mxu0
    %v516 = vld [vmem:[%s6 + $0xe8] sm:$0xf]
    %v517 = vld [vmem:[%s6 + $0xec] sm:$0xf]
    %v518 = vld [vmem:[%s6 + $0xf0] sm:$0xf]
    %v519 = vld [vmem:[%s6 + $0xf4] sm:$0xf]
    %v520 = vperm.slane %v34, 6
    %v525 = vunpack.c.l.b16 %v516
    %v526 = vunpack.c.l.b16 %v517
    %v527 = vunpack.c.l.b16 %v518
    %v528 = vunpack.c.l.b16 %v519
    %v529 = vpack.c.b16 %v526, %v525
    %v530 = vpack.c.b16 %v528, %v527
    %533 = vmatpush.bf16.msra.mxu0 0
    %534 = vmatpush.bf16.msra.mxu0 0
    %535 = vmatpush.bf16.msra.mxu0 0
    %536 = vmatpush.bf16.msra.mxu0 0
    %537 = vmatpush.bf16.msra.mxu0 0
    %538 = vmatpush.bf16.msra.mxu0 0
    %539 = vmatpush.bf16.msra.mxu0 %v530
    %540 = vmatpush.bf16.msra.mxu0 %v529
    %541 = vmatmul.bf16.gmra.mxu0 %v484
    %v542 = vpop.f32.mrf.mxu0
    %v543 = vadd.f32 %v520, %v542
    %v544 = vpop.f32.mrf.mxu0
    %v545 = vadd.f32 %v520, %v544
    %546 = vmatmul.bf16.gmra.mxu0 %v487
    %v547 = vpop.f32.mrf.mxu0
    %v548 = vadd.f32 %v520, %v547
    %v549 = vpop.f32.mrf.mxu0
    %v550 = vadd.f32 %v520, %v549
    %551 = vmatmul.bf16.gmra.mxu0 %v490
    %v552 = vpop.f32.mrf.mxu0
    %v553 = vadd.f32 %v520, %v552
    %v554 = vpop.f32.mrf.mxu0
    %v555 = vadd.f32 %v520, %v554
    %556 = vdwg.mxu0
    %v557 = vld [vmem:[%s6 + $0xf8] sm:$0xf]
    %v558 = vld [vmem:[%s6 + $0xfc] sm:$0xf]
    %v559 = vld [vmem:[%s6 + $0x100] sm:$0xf]
    %v560 = vld [vmem:[%s6 + $0x104] sm:$0xf]
    %v561 = vperm.slane %v34, 7
    %v566 = vunpack.c.l.b16 %v557
    %v567 = vunpack.c.l.b16 %v558
    %v568 = vunpack.c.l.b16 %v559
    %v569 = vunpack.c.l.b16 %v560
    %v570 = vpack.c.b16 %v567, %v566
    %v571 = vpack.c.b16 %v569, %v568
    %574 = vmatpush.bf16.msra.mxu0 0
    %575 = vmatpush.bf16.msra.mxu0 0
    %576 = vmatpush.bf16.msra.mxu0 0
    %577 = vmatpush.bf16.msra.mxu0 0
    %578 = vmatpush.bf16.msra.mxu0 0
    %579 = vmatpush.bf16.msra.mxu0 0
    %580 = vmatpush.bf16.msra.mxu0 %v571
    %581 = vmatpush.bf16.msra.mxu0 %v570
    %582 = vmatmul.bf16.gmra.mxu0 %v484
    %v583 = vpop.f32.mrf.mxu0
    %v584 = vadd.f32 %v561, %v583
    %v585 = vpop.f32.mrf.mxu0
    %v586 = vadd.f32 %v561, %v585
    %587 = vmatmul.bf16.gmra.mxu0 %v487
    %v588 = vpop.f32.mrf.mxu0
    %v589 = vadd.f32 %v561, %v588
    %v590 = vpop.f32.mrf.mxu0
    %v591 = vadd.f32 %v561, %v590
    %592 = vmatmul.bf16.gmra.mxu0 %v490
    %v593 = vpop.f32.mrf.mxu0
    %v594 = vadd.f32 %v561, %v593
    %v595 = vpop.f32.mrf.mxu0
    %v596 = vadd.f32 %v561, %v595
    %597 = vdwg.mxu0
    %v598 = vpack.c.bf16 %v504, %v502
    %v599 = vpack.c.bf16 %v509, %v507
    %v600 = vpack.c.bf16 %v514, %v512
    %v601 = vpack.c.bf16 %v545, %v543
    %v602 = vpack.c.bf16 %v550, %v548
    %v603 = vpack.c.bf16 %v555, %v553
    %v605 = vsel %vm323, %v598, 0
    %v608 = vsel %vm323, %v599, 0
    %v611 = vsel %vm323, %v600, 0
    %v614 = vsel %vm323, %v601, 0
    %v617 = vsel %vm323, %v602, 0
    %v620 = vsel %vm323, %v603, 0
    %622 = vmatpush.bf16.xpose.msra.mxu0 0
    %623 = vmatpush.bf16.xpose.msra.mxu0 0
    %624 = vmatpush.bf16.xpose.msra.mxu0 0
    %625 = vmatpush.bf16.xpose.msra.mxu0 0
    %626 = vmatpush.bf16.xpose.msra.mxu0 0
    %627 = vmatpush.bf16.xpose.msra.mxu0 %v620
    %628 = vmatpush.bf16.xpose.msra.mxu0 %v617
    %629 = vmatpush.bf16.xpose.msra.mxu0 %v614
    %630 = vmatmul.bf16.gmra.mxu0 %v605
    %v631 = vpop.f32.mrf.mxu0
    %v632 = vadd.f32 0.0, %v631
    %v633 = vpop.f32.mrf.mxu0
    %v634 = vadd.f32 0.0, %v633
    %635 = vmatmul.bf16.gmra.mxu0 %v608
    %v636 = vpop.f32.mrf.mxu0
    %v637 = vadd.f32 0.0, %v636
    %v638 = vpop.f32.mrf.mxu0
    %v639 = vadd.f32 0.0, %v638
    %640 = vmatmul.bf16.gmra.mxu0 %v611
    %v641 = vpop.f32.mrf.mxu0
    %v642 = vadd.f32 0.0, %v641
    %v643 = vpop.f32.mrf.mxu0
    %v644 = vadd.f32 0.0, %v643
    %645 = vdwg.mxu0
    %v646 = vmul.f32 %v632, 0.17677669
    %v647 = vmul.f32 %v634, 0.17677669
    %v648 = vmul.f32 %v637, 0.17677669
    %v649 = vmul.f32 %v639, 0.17677669
    %v650 = vmul.f32 %v642, 0.17677669
    %v651 = vmul.f32 %v644, 0.17677669
    %v652 = vld [vmem:[%s5] sm:$0xff]
    %v653 = vld [vmem:[%s5 + $0x8] sm:$0xff]
    %v654 = vld [vmem:[%s5 + $0x10] sm:$0xff]
    %v655 = vld [vmem:[%s5 + $0x18] sm:$0xff]
    %v656 = vld [vmem:[%s5 + $0x20] sm:$0xff]
    %v657 = vld [vmem:[%s5 + $0x28] sm:$0x3]
    %v658 = vadd.f32 %v646, %v652
    %v659 = vadd.f32 %v647, %v653
    %v660 = vadd.f32 %v648, %v654
    %v661 = vadd.f32 %v649, %v655
    %v662 = vadd.f32 %v650, %v656
    %v663 = vadd.f32 %v651, %v657
    %vm664 = vcmask 343040
    %v665 = vsel %vm664, %v658, -inf
    %666 = vmax.xlane.f32.xlu0 %v665
    %v667 = vpop.xlane.xlu0 %666
    %v668 = vsel %vm664, %v659, -inf
    %669 = vmax.xlane.f32.xlu0 %v668
    %v670 = vpop.xlane.xlu0 %669
    %v671 = vsel %vm664, %v660, -inf
    %672 = vmax.xlane.f32.xlu0 %v671
    %v673 = vpop.xlane.xlu0 %672
    %v674 = vsel %vm664, %v661, -inf
    %675 = vmax.xlane.f32.xlu0 %v674
    %v676 = vpop.xlane.xlu0 %675
    %v677 = vsel %vm664, %v662, -inf
    %678 = vmax.xlane.f32.xlu0 %v677
    %v679 = vpop.xlane.xlu0 %678
    %vm680 = vcmask 336896
    %v681 = vsel %vm680, %v663, -inf
    %682 = vmax.xlane.f32.xlu0 %v681
    %v683 = vpop.xlane.xlu0 %682
    %v684 = vsub.f32 %v658, %v667
    %v685 = vsub.f32 %v659, %v670
    %v686 = vsub.f32 %v660, %v673
    %v687 = vsub.f32 %v661, %v676
    %v688 = vsub.f32 %v662, %v679
    %v689 = vsub.f32 %v663, %v683
    %v690 = vmul.f32 %v684, 1.442695
    %v691 = vpow.pop %v690
    %v692 = vmul.f32 %v685, 1.442695
    %v693 = vpow.pop %v692
    %v694 = vmul.f32 %v686, 1.442695
    %v695 = vpow.pop %v694
    %v696 = vmul.f32 %v687, 1.442695
    %v697 = vpow.pop %v696
    %v698 = vmul.f32 %v688, 1.442695
    %v699 = vpow.pop %v698
    %v700 = vmul.f32 %v689, 1.442695
    %v701 = vpow.pop %v700
    %v702 = vsel %vm664, %v691, 0.0
    %703 = vadd.xlane.f32.xlu0 %v702
    %v704 = vpop.xlane.xlu0 %703
    %v705 = vsel %vm664, %v693, 0.0
    %706 = vadd.xlane.f32.xlu0 %v705
    %v707 = vpop.xlane.xlu0 %706
    %v708 = vsel %vm664, %v695, 0.0
    %709 = vadd.xlane.f32.xlu0 %v708
    %v710 = vpop.xlane.xlu0 %709
    %v711 = vsel %vm664, %v697, 0.0
    %712 = vadd.xlane.f32.xlu0 %v711
    %v713 = vpop.xlane.xlu0 %712
    %v714 = vsel %vm664, %v699, 0.0
    %715 = vadd.xlane.f32.xlu0 %v714
    %v716 = vpop.xlane.xlu0 %715
    %v717 = vsel %vm680, %v701, 0.0
    %718 = vadd.xlane.f32.xlu0 %v717
    %v719 = vpop.xlane.xlu0 %718
    %v720 = vrcp.pop %v704
    %v721 = vrcp.pop %v707
    %v722 = vrcp.pop %v710
    %v723 = vrcp.pop %v713
    %v724 = vrcp.pop %v716
    %v725 = vrcp.pop %v719
    %v726 = vmul.f32 %v691, %v720
    %v727 = vmul.f32 %v693, %v721
    %v728 = vmul.f32 %v695, %v722
    %v729 = vmul.f32 %v697, %v723
    %v730 = vmul.f32 %v699, %v724
    %v731 = vmul.f32 %v701, %v725
    %v732 = vpack.c.bf16 %v727, %v726
    %v733 = vpack.c.bf16 %v729, %v728
    %v734 = vpack.c.bf16 %v731, %v730
    %v735 = vpack.c.bf16 %v586, %v584
    %v736 = vpack.c.bf16 %v591, %v589
    %v737 = vpack.c.bf16 %v596, %v594
    %v739 = vsel %vm664, %v732, 0
    %v742 = vsel %vm664, %v733, 0
    %v745 = vsel %vm664, %v734, 0
    %vm747 = vcmask 1044480
    %v749 = vsel %vm747, %v737, 0
    %751 = vmatpush.bf16.msra.mxu0 0
    %752 = vmatpush.bf16.msra.mxu0 0
    %753 = vmatpush.bf16.msra.mxu0 0
    %754 = vmatpush.bf16.msra.mxu0 0
    %755 = vmatpush.bf16.msra.mxu0 0
    %756 = vmatpush.bf16.msra.mxu0 %v749
    %757 = vmatpush.bf16.msra.mxu0 %v736
    %758 = vmatpush.bf16.msra.mxu0 %v735
    %759 = vmatmul.bf16.gmra.mxu0 %v739
    %v760 = vpop.f32.mrf.mxu0
    %v761 = vadd.f32 0.0, %v760
    %v762 = vpop.f32.mrf.mxu0
    %v763 = vadd.f32 0.0, %v762
    %764 = vmatmul.bf16.gmra.mxu0 %v742
    %v765 = vpop.f32.mrf.mxu0
    %v766 = vadd.f32 0.0, %v765
    %v767 = vpop.f32.mrf.mxu0
    %v768 = vadd.f32 0.0, %v767
    %769 = vmatmul.bf16.gmra.mxu0 %v745
    %v770 = vpop.f32.mrf.mxu0
    %v771 = vadd.f32 0.0, %v770
    %v772 = vpop.f32.mrf.mxu0
    %v773 = vadd.f32 0.0, %v772
    %774 = vdwg.mxu0
    %v775 = vpack.c.bf16 %v763, %v761
    %v776 = vpack.c.bf16 %v768, %v766
    %v777 = vpack.c.bf16 %v773, %v771
    %v778 = vld [vmem:[%s6 + $0x108] sm:$0xf]
    %v779 = vld [vmem:[%s6 + $0x10c] sm:$0xf]
    %v780 = vld [vmem:[%s6 + $0x110] sm:$0xf]
    %v781 = vld [vmem:[%s6 + $0x114] sm:$0xf]
    %v786 = vunpack.c.l.b16 %v778
    %v787 = vunpack.c.l.b16 %v779
    %v788 = vunpack.c.l.b16 %v780
    %v789 = vunpack.c.l.b16 %v781
    %v790 = vpack.c.b16 %v787, %v786
    %v791 = vpack.c.b16 %v789, %v788
    %v795 = vsel %vm323, %v775, 0
    %v798 = vsel %vm323, %v776, 0
    %v801 = vsel %vm323, %v777, 0
    %803 = vmatpush.bf16.msra.mxu0 0
    %804 = vmatpush.bf16.msra.mxu0 0
    %805 = vmatpush.bf16.msra.mxu0 0
    %806 = vmatpush.bf16.msra.mxu0 0
    %807 = vmatpush.bf16.msra.mxu0 0
    %808 = vmatpush.bf16.msra.mxu0 0
    %809 = vmatpush.bf16.msra.mxu0 %v791
    %810 = vmatpush.bf16.msra.mxu0 %v790
    %811 = vmatmul.bf16.gmra.mxu0 %v795
    %v812 = vpop.f32.mrf.mxu0
    %v813 = vadd.f32 0.0, %v812
    %v814 = vpop.f32.mrf.mxu0
    %v815 = vadd.f32 0.0, %v814
    %816 = vmatmul.bf16.gmra.mxu0 %v798
    %v817 = vpop.f32.mrf.mxu0
    %v818 = vadd.f32 0.0, %v817
    %v819 = vpop.f32.mrf.mxu0
    %v820 = vadd.f32 0.0, %v819
    %821 = vmatmul.bf16.gmra.mxu0 %v801
    %v822 = vpop.f32.mrf.mxu0
    %v823 = vadd.f32 0.0, %v822
    %v824 = vpop.f32.mrf.mxu0
    %v825 = vadd.f32 0.0, %v824
    %826 = vdwg.mxu0
    %v827 = vadd.f32 %v457, %v813
    %v828 = vadd.f32 %v458, %v815
    %v829 = vadd.f32 %v459, %v818
    %v830 = vadd.f32 %v460, %v820
    %v831 = vadd.f32 %v461, %v823
    %v832 = vadd.f32 %v462, %v825
    %v833 = vperm.slane %v35, 0
    %v834 = vadd.f32 %v827, %v833
    %v835 = vadd.f32 %v828, %v833
    %v836 = vadd.f32 %v829, %v833
    %v837 = vadd.f32 %v830, %v833
    %v838 = vadd.f32 %v831, %v833
    %v839 = vadd.f32 %v832, %v833
    %v840 = vpack.c.bf16 %v835, %v834
    %v841 = vpack.c.bf16 %v837, %v836
    %v842 = vpack.c.bf16 %v839, %v838
    %v843 = vld [vmem:[%s7] sm:$0xf]
    %v844 = vld [vmem:[%s7 + $0x4] sm:$0xf]
    %v845 = vld [vmem:[%s7 + $0x8] sm:$0xf]
    %v846 = vld [vmem:[%s7 + $0xc] sm:$0xf]
    %v847 = vperm.slane %v35, 1
    %v852 = vunpack.c.l.b16 %v843
    %v853 = vunpack.c.l.b16 %v844
    %v854 = vunpack.c.l.b16 %v845
    %v855 = vunpack.c.l.b16 %v846
    %v856 = vpack.c.b16 %v853, %v852
    %v857 = vpack.c.b16 %v855, %v854
    %v861 = vsel %vm323, %v840, 0
    %v864 = vsel %vm323, %v841, 0
    %v867 = vsel %vm323, %v842, 0
    %869 = vmatpush.bf16.msra.mxu0 0
    %870 = vmatpush.bf16.msra.mxu0 0
    %871 = vmatpush.bf16.msra.mxu0 0
    %872 = vmatpush.bf16.msra.mxu0 0
    %873 = vmatpush.bf16.msra.mxu0 0
    %874 = vmatpush.bf16.msra.mxu0 0
    %875 = vmatpush.bf16.msra.mxu0 %v857
    %876 = vmatpush.bf16.msra.mxu0 %v856
    %877 = vmatmul.bf16.gmra.mxu0 %v861
    %v878 = vpop.f32.mrf.mxu0
    %v879 = vadd.f32 %v847, %v878
    %v880 = vpop.f32.mrf.mxu0
    %v881 = vadd.f32 %v847, %v880
    %882 = vmatmul.bf16.gmra.mxu0 %v864
    %v883 = vpop.f32.mrf.mxu0
    %v884 = vadd.f32 %v847, %v883
    %v885 = vpop.f32.mrf.mxu0
    %v886 = vadd.f32 %v847, %v885
    %887 = vmatmul.bf16.gmra.mxu0 %v867
    %v888 = vpop.f32.mrf.mxu0
    %v889 = vadd.f32 %v847, %v888
    %v890 = vpop.f32.mrf.mxu0
    %v891 = vadd.f32 %v847, %v890
    %892 = vdwg.mxu0
    %v893 = vxor.u32 %v879, 2147483648
    %v894 = vxor.u32 %v881, 2147483648
    %v895 = vxor.u32 %v884, 2147483648
    %v896 = vxor.u32 %v886, 2147483648
    %v897 = vxor.u32 %v889, 2147483648
    %v898 = vxor.u32 %v891, 2147483648
    %v899 = vmul.f32 %v893, 1.442695
    %v900 = vpow.pop %v899
    %v901 = vmul.f32 %v894, 1.442695
    %v902 = vpow.pop %v901
    %v903 = vmul.f32 %v895, 1.442695
    %v904 = vpow.pop %v903
    %v905 = vmul.f32 %v896, 1.442695
    %v906 = vpow.pop %v905
    %v907 = vmul.f32 %v897, 1.442695
    %v908 = vpow.pop %v907
    %v909 = vmul.f32 %v898, 1.442695
    %v910 = vpow.pop %v909
    %v911 = vadd.f32 %v900, 1.0
    %v912 = vadd.f32 %v902, 1.0
    %v913 = vadd.f32 %v904, 1.0
    %v914 = vadd.f32 %v906, 1.0
    %v915 = vadd.f32 %v908, 1.0
    %v916 = vadd.f32 %v910, 1.0
    %v917 = vrcp.pop %v911
    %v918 = vmul.f32 %v911, %v917
    %v919 = vsub.f32 1.0, %v918
    %v920 = vmul.f32 %v917, %v919
    %v921 = vadd.f32 %v917, %v920
    %vm922 = vweird.f32 %v911
    %vm923 = vweird.f32 %v917
    %vm924 = vmor %vm922, %vm923
    %v925 = vsel %vm924, %v917, %v921
    %v926 = vand.u32 2147483647, %v911
    %vm927 = vcmp.eq.f32.partialorder %v926, 8.507059e+37
    %v928 = vand.u32 %v911, 2147483648
    %v929 = vor.u32 1.1754944e-38, %v928
    %v930 = vsel %vm927, %v929, %v925
    %v931 = vmul.f32 1.0, %v930
    %v932 = vrcp.pop %v912
    %v933 = vmul.f32 %v912, %v932
    %v934 = vsub.f32 1.0, %v933
    %v935 = vmul.f32 %v932, %v934
    %v936 = vadd.f32 %v932, %v935
    %vm937 = vweird.f32 %v912
    %vm938 = vweird.f32 %v932
    %vm939 = vmor %vm937, %vm938
    %v940 = vsel %vm939, %v932, %v936
    %v941 = vand.u32 2147483647, %v912
    %vm942 = vcmp.eq.f32.partialorder %v941, 8.507059e+37
    %v943 = vand.u32 %v912, 2147483648
    %v944 = vor.u32 1.1754944e-38, %v943
    %v945 = vsel %vm942, %v944, %v940
    %v946 = vmul.f32 1.0, %v945
    %v947 = vrcp.pop %v913
    %v948 = vmul.f32 %v913, %v947
    %v949 = vsub.f32 1.0, %v948
    %v950 = vmul.f32 %v947, %v949
    %v951 = vadd.f32 %v947, %v950
    %vm952 = vweird.f32 %v913
    %vm953 = vweird.f32 %v947
    %vm954 = vmor %vm952, %vm953
    %v955 = vsel %vm954, %v947, %v951
    %v956 = vand.u32 2147483647, %v913
    %vm957 = vcmp.eq.f32.partialorder %v956, 8.507059e+37
    %v958 = vand.u32 %v913, 2147483648
    %v959 = vor.u32 1.1754944e-38, %v958
    %v960 = vsel %vm957, %v959, %v955
    %v961 = vmul.f32 1.0, %v960
    %v962 = vrcp.pop %v914
    %v963 = vmul.f32 %v914, %v962
    %v964 = vsub.f32 1.0, %v963
    %v965 = vmul.f32 %v962, %v964
    %v966 = vadd.f32 %v962, %v965
    %vm967 = vweird.f32 %v914
    %vm968 = vweird.f32 %v962
    %vm969 = vmor %vm967, %vm968
    %v970 = vsel %vm969, %v962, %v966
    %v971 = vand.u32 2147483647, %v914
    %vm972 = vcmp.eq.f32.partialorder %v971, 8.507059e+37
    %v973 = vand.u32 %v914, 2147483648
    %v974 = vor.u32 1.1754944e-38, %v973
    %v975 = vsel %vm972, %v974, %v970
    %v976 = vmul.f32 1.0, %v975
    %v977 = vrcp.pop %v915
    %v978 = vmul.f32 %v915, %v977
    %v979 = vsub.f32 1.0, %v978
    %v980 = vmul.f32 %v977, %v979
    %v981 = vadd.f32 %v977, %v980
    %vm982 = vweird.f32 %v915
    %vm983 = vweird.f32 %v977
    %vm984 = vmor %vm982, %vm983
    %v985 = vsel %vm984, %v977, %v981
    %v986 = vand.u32 2147483647, %v915
    %vm987 = vcmp.eq.f32.partialorder %v986, 8.507059e+37
    %v988 = vand.u32 %v915, 2147483648
    %v989 = vor.u32 1.1754944e-38, %v988
    %v990 = vsel %vm987, %v989, %v985
    %v991 = vmul.f32 1.0, %v990
    %v992 = vrcp.pop %v916
    %v993 = vmul.f32 %v916, %v992
    %v994 = vsub.f32 1.0, %v993
    %v995 = vmul.f32 %v992, %v994
    %v996 = vadd.f32 %v992, %v995
    %vm997 = vweird.f32 %v916
    %vm998 = vweird.f32 %v992
    %vm999 = vmor %vm997, %vm998
    %v1000 = vsel %vm999, %v992, %v996
    %v1001 = vand.u32 2147483647, %v916
    %vm1002 = vcmp.eq.f32.partialorder %v1001, 8.507059e+37
    %v1003 = vand.u32 %v916, 2147483648
    %v1004 = vor.u32 1.1754944e-38, %v1003
    %v1005 = vsel %vm1002, %v1004, %v1000
    %v1006 = vmul.f32 1.0, %v1005
    %v1007 = vmul.f32 %v879, %v931
    %v1008 = vmul.f32 %v881, %v946
    %v1009 = vmul.f32 %v884, %v961
    %v1010 = vmul.f32 %v886, %v976
    %v1011 = vmul.f32 %v889, %v991
    %v1012 = vmul.f32 %v891, %v1006
    %v1013 = vpack.c.bf16 %v1008, %v1007
    %v1014 = vpack.c.bf16 %v1010, %v1009
    %v1015 = vpack.c.bf16 %v1012, %v1011
    %v1016 = vld [vmem:[%s6 + $0x118] sm:$0xf]
    %v1017 = vld [vmem:[%s6 + $0x11c] sm:$0xf]
    %v1018 = vld [vmem:[%s6 + $0x120] sm:$0xf]
    %v1019 = vld [vmem:[%s6 + $0x124] sm:$0xf]
    %v1020 = vld [vmem:[%s6 + $0x128] sm:$0xf]
    %v1021 = vld [vmem:[%s6 + $0x12c] sm:$0xf]
    %v1022 = vld [vmem:[%s6 + $0x130] sm:$0xf]
    %v1023 = vld [vmem:[%s6 + $0x134] sm:$0xf]
    %v1024 = vld [vmem:[%s6 + $0x138] sm:$0xf]
    %v1025 = vld [vmem:[%s6 + $0x13c] sm:$0xf]
    %v1026 = vld [vmem:[%s6 + $0x140] sm:$0xf]
    %v1027 = vld [vmem:[%s6 + $0x144] sm:$0xf]
    %v1028 = vld [vmem:[%s6 + $0x148] sm:$0xf]
    %v1029 = vld [vmem:[%s6 + $0x14c] sm:$0xf]
    %v1030 = vld [vmem:[%s6 + $0x150] sm:$0xf]
    %v1031 = vld [vmem:[%s6 + $0x154] sm:$0xf]
    %v1048 = vunpack.c.l.b16 %v1016
    %v1049 = vunpack.c.l.b16 %v1017
    %v1050 = vunpack.c.l.b16 %v1018
    %v1051 = vunpack.c.l.b16 %v1019
    %v1052 = vunpack.c.l.b16 %v1020
    %v1053 = vunpack.c.l.b16 %v1021
    %v1054 = vunpack.c.l.b16 %v1022
    %v1055 = vunpack.c.l.b16 %v1023
    %v1056 = vunpack.c.l.b16 %v1024
    %v1057 = vunpack.c.l.b16 %v1025
    %v1058 = vunpack.c.l.b16 %v1026
    %v1059 = vunpack.c.l.b16 %v1027
    %v1060 = vunpack.c.l.b16 %v1028
    %v1061 = vunpack.c.l.b16 %v1029
    %v1062 = vunpack.c.l.b16 %v1030
    %v1063 = vunpack.c.l.b16 %v1031
    %v1064 = vpack.c.b16 %v1049, %v1048
    %v1065 = vpack.c.b16 %v1051, %v1050
    %v1066 = vpack.c.b16 %v1053, %v1052
    %v1067 = vpack.c.b16 %v1055, %v1054
    %v1068 = vpack.c.b16 %v1057, %v1056
    %v1069 = vpack.c.b16 %v1059, %v1058
    %v1070 = vpack.c.b16 %v1061, %v1060
    %v1071 = vpack.c.b16 %v1063, %v1062
    %1080 = vmatpush.bf16.msra.mxu0 %v1071
    %1081 = vmatpush.bf16.msra.mxu0 %v1070
    %1082 = vmatpush.bf16.msra.mxu0 %v1069
    %1083 = vmatpush.bf16.msra.mxu0 %v1068
    %1084 = vmatpush.bf16.msra.mxu0 %v1067
    %1085 = vmatpush.bf16.msra.mxu0 %v1066
    %1086 = vmatpush.bf16.msra.mxu0 %v1065
    %1087 = vmatpush.bf16.msra.mxu0 %v1064
    %1088 = vmatmul.bf16.gmra.mxu0 %v1013
    %v1089 = vpop.f32.mrf.mxu0
    %v1090 = vpop.f32.mrf.mxu0
    %1091 = vmatmul.bf16.gmra.mxu0 %v1014
    %v1092 = vpop.f32.mrf.mxu0
    %v1093 = vpop.f32.mrf.mxu0
    %v1094 = vadd.f32 0.0, %v1093
    %1095 = vmatmul.bf16.gmra.mxu0 %v1015
    %v1096 = vpop.f32.mrf.mxu0
    %v1097 = vadd.f32 0.0, %v1096
    %v1098 = vpop.f32.mrf.mxu0
    %1099 = vdwg.mxu0
    %v1100 = vadd.f32 %v837, %v1094
    %v1101 = vadd.f32 %v838, %v1097
    %v1102 = vperm.slane %v35, 2
    %v1103 = vadd.f32 %v1100, %v1102
    %v1104 = vadd.f32 %v1101, %v1102
    %v1105 = vpack.c.bf16 %v1104, %v1103
    %v1106 = vld [vmem:[%s7 + $0x10] sm:$0xf]
    %v1107 = vld [vmem:[%s7 + $0x14] sm:$0xf]
    %v1108 = vld [vmem:[%s7 + $0x18] sm:$0xf]
    %v1109 = vld [vmem:[%s7 + $0x1c] sm:$0xf]
    %v1110 = vperm.slane %v35, 3
    %v1115 = vunpack.c.l.b16 %v1106
    %v1116 = vunpack.c.l.b16 %v1107
    %v1117 = vunpack.c.l.b16 %v1108
    %v1118 = vunpack.c.l.b16 %v1109
    %v1119 = vpack.c.b16 %v1116, %v1115
    %v1120 = vpack.c.b16 %v1118, %v1117
    %v1124 = vsel %vm323, %v1105, 0
    %1126 = vmatpush.bf16.msra.mxu0 0
    %1127 = vmatpush.bf16.msra.mxu0 0
    %1128 = vmatpush.bf16.msra.mxu0 0
    %1129 = vmatpush.bf16.msra.mxu0 0
    %1130 = vmatpush.bf16.msra.mxu0 0
    %1131 = vmatpush.bf16.msra.mxu0 0
    %1132 = vmatpush.bf16.msra.mxu0 %v1120
    %1133 = vmatpush.bf16.msra.mxu0 %v1119
    %1134 = vmatmul.bf16.gmra.mxu0 %v1124
    %v1135 = vpop.f32.mrf.mxu0
    %v1136 = vadd.f32 %v1110, %v1135
    %v1137 = vpop.f32.mrf.mxu0
    %v1138 = vadd.f32 %v1110, %v1137
    %1139 = vdwg.mxu0
    %v1140 = vsub.f32 %v1136, %v50
    %v1141 = vsub.f32 %v1138, %v51
    %v1142 = vmul.f32 %v1140, %v1140
    %v1143 = vmul.f32 %v1141, %v1141
    %1144 = vst [vmem:[#allocation3] sm:$0xff] %v1142
    %1145 = vst [vmem:[#allocation3 + $0x8] sm:$0xff] %v1143
    // Predicated region
    $region38: #{tpu_custom_call.1} parent=1 // pred_check
      _
    $region39: #{tpu_custom_call.1} parent=1 // pred_check_branch
      %1147 = sbr.rel (0) target = $region41
    $region40: #{tpu_custom_call.1} parent=1 // pred_region
      %1149 = vsyncadd [#allocation4], 0
      %s1150 = sshll.u32 [#allocation3], 4
      %s1151 = int_to_ptr.vmem [resolvable:$true] %s1150
      %s1152 = sshll.u32 %s9, 4
      %s1153 = int_to_ptr.hbm [resolvable:$true] %s1152
      %1158 = dma.vmem_to_hbm [thread:$0]  %s1151, 256, %s1153, [#allocation4], 128, 128, 8
    $region41: #{tpu_custom_call.1} parent=1 // pred_fallthru
      _
    // Predicated region
    $region42: #{tpu_custom_call.1} parent=1 // pred_check
      _
    $region43: #{tpu_custom_call.1} parent=1 // pred_check_branch
      %1160 = sbr.rel (0) target = $region45
    $region44: #{tpu_custom_call.1} parent=1 // pred_region
      %1162 = dma.done [#allocation4], 256
    $region45: #{tpu_custom_call.1} parent=1 // pred_fallthru
      _
    %1163 = vsyncpa [#allocation4], 1

</llo_original>
